<compile_context>
chip_gen: v5e
topology: v5e:2x2
jax: 0.10.0
libtpu: 0.0.40
codegen_flags: <defaults>
</compile_context>

<pallas_src>
import functools

import jax
import jax.numpy as jnp
from jax.experimental import pallas as pl
from jax.experimental.pallas import tpu as pltpu

DROP_P = 0.4
KEEP_P = 1.0 - DROP_P


def _flash_attn_dropout_kernel(q_ref, k_ref, v_ref, keep_ref, o_ref,
                               m_sc, l_sc, acc_sc, *, scale):
    # q_ref: (TB, Lq, D), k_ref/v_ref: (TB, TLk, D/Dv), keep_ref: (TB, Lq, TLk) uint8
    # o_ref: (TB, Lq, Dv); scratch: m/l (TB, Lq, 1) f32, acc (TB, Lq, Dv) f32
    kv = pl.program_id(1)

    @pl.when(kv == 0)
    def _():
        m_sc[...] = jnp.full_like(m_sc, -jnp.inf)
        l_sc[...] = jnp.zeros_like(l_sc)
        acc_sc[...] = jnp.zeros_like(acc_sc)

    # Fold the 1/Lk**0.25 scale into q (small tensor); bf16 MXU operands,
    # f32 accumulation.
    q = (q_ref[...] * scale).astype(jnp.bfloat16)
    k = k_ref[...].astype(jnp.bfloat16)
    s = jnp.einsum("bqd,bkd->bqk", q, k,
                   preferred_element_type=jnp.float32)         # (TB, Lq, TLk)

    m_prev = m_sc[...]
    m_new = jnp.maximum(m_prev, jnp.max(s, axis=-1, keepdims=True))
    alpha = jnp.exp(m_prev - m_new)                             # rescale old stats
    p = jnp.exp(s - m_new)                                      # unnormalized probs, f32

    # Softmax denominator uses the UNmasked probs (dropout is applied post-softmax).
    l_sc[...] = alpha * l_sc[...] + jnp.sum(p, axis=-1, keepdims=True)

    # Dropout: keep-mask is uint8 {0,1}; the exact 1/KEEP_P is folded into the
    # final normalization instead of scaling the full (Lq, TLk) tile.
    pm = (p * keep_ref[...].astype(jnp.float32)).astype(jnp.bfloat16)
    v = v_ref[...].astype(jnp.bfloat16)
    acc_sc[...] = alpha * acc_sc[...] + jnp.einsum(
        "bqk,bkd->bqd", pm, v, preferred_element_type=jnp.float32)
    m_sc[...] = m_new

    @pl.when(kv == pl.num_programs(1) - 1)
    def _():
        inv = pl.reciprocal(l_sc[...] * KEEP_P, approx=True)    # EUP slot, ~free
        o_ref[...] = (acc_sc[...] * inv).astype(o_ref.dtype)


def _pick_tb(b):
    """Largest divisor of b that still leaves >=2 batch grid steps so both v7x
    TensorCores get work; trivially b when b < 2."""
    if b < 2:
        return max(b, 1)
    best = 1
    for tb in range(1, b):
        if b % tb == 0 and (b // tb) >= 2:
            best = tb
    return best


def _footprint_bytes(TB, Lq, D, TLk, Dv):
    """Per-step VMEM: double-buffered in/out blocks + single-buffered f32 scratch."""
    per_step_in = TB * (Lq * D * 4 + TLk * D * 4 + TLk * Dv * 4 + Lq * TLk * 1)
    per_step_out = TB * Lq * Dv * 4
    scratch = TB * (2 * Lq * 4 + Lq * Dv * 4)
    return 2 * (per_step_in + per_step_out) + scratch


def _vmem_capacity_bytes():
    try:
        return int(pltpu.get_tpu_info().vmem_capacity_bytes)
    except Exception:
        return 64 * 1024 * 1024   # conservative (v7x per-TC)


def _pick_tlk(TB, Lq, D, Lk, Dv, budget):
    """Largest lane-dense (multiple-of-128) kv tile dividing Lk that fits budget,
    capped at 512 so long sequences still get pipelined kv steps."""
    if Lk <= 128:
        return Lk
    cands = [c for c in range(128, min(Lk, 512) + 1, 128) if Lk % c == 0]
    if not cands:
        return Lk
    for c in reversed(cands):
        if _footprint_bytes(TB, Lq, D, c, Dv) <= budget:
            return c
    return cands[0]


def attention_dropout(q, k, v, keep_mask):
    """q [B,Lq,D], k [B,Lk,D], v [B,Lk,Dv] float32; keep_mask [B,Lq,Lk] uint8 {0,1}.
    Returns dropout(softmax(q @ k^T / Lk**0.25)) @ v with nn.Dropout(p=0.4)
    training semantics (inverted dropout, mask supplied externally)."""
    B, Lq, D = q.shape
    _, Lk, _ = k.shape
    Dv = v.shape[-1]
    scale = 1.0 / (float(Lk) ** 0.25)               # k.size(-2) ** 0.25

    budget = _vmem_capacity_bytes() // 2
    TB = _pick_tb(B)
    TLk = _pick_tlk(TB, Lq, D, Lk, Dv, budget)
    grid = (B // TB, Lk // TLk)

    fp = _footprint_bytes(TB, Lq, D, TLk, Dv)
    vmem_limit = int(min(budget, max(2 * fp + (4 << 20), 32 << 20)))

    cost = pl.CostEstimate(
        flops=2 * B * Lq * Lk * (D + Dv),
        transcendentals=B * Lq * Lk,
        bytes_accessed=(q.size * 4 + k.size * 4 + v.size * 4
                        + keep_mask.size + B * Lq * Dv * 4))

    kernel = functools.partial(_flash_attn_dropout_kernel, scale=scale)

    return pl.pallas_call(
        kernel,
        out_shape=jax.ShapeDtypeStruct((B, Lq, Dv), jnp.float32),
        grid_spec=pltpu.PrefetchScalarGridSpec(
            num_scalar_prefetch=0,
            grid=grid,
            in_specs=[
                pl.BlockSpec((TB, Lq, D), lambda b, j: (b, 0, 0)),
                pl.BlockSpec((TB, TLk, D), lambda b, j: (b, j, 0)),
                pl.BlockSpec((TB, TLk, Dv), lambda b, j: (b, j, 0)),
                pl.BlockSpec((TB, Lq, TLk), lambda b, j: (b, 0, j)),
            ],
            out_specs=pl.BlockSpec((TB, Lq, Dv), lambda b, j: (b, 0, 0)),
            scratch_shapes=[
                pltpu.VMEM((TB, Lq, 1), jnp.float32),    # running max m
                pltpu.VMEM((TB, Lq, 1), jnp.float32),    # running denom l
                pltpu.VMEM((TB, Lq, Dv), jnp.float32),   # running output acc
            ],
        ),
        compiler_params=pltpu.CompilerParams(
            dimension_semantics=("parallel", "arbitrary"),
            vmem_limit_bytes=vmem_limit),
        cost_estimate=cost,
    )(q, k, v, keep_mask)


if __name__ == "__main__":
    # Small but MXU/lane friendly shapes: D/Dv/Lk multiples of 128 (lane-dense
    # loads/stores, full MXU contraction), Lq=128 fills the systolic array,
    # Lk=256 exercises the kv grid axis (2 online-softmax steps), B=2 gives the
    # parallel batch axis 2 steps.
    B, Lq, Lk, D, Dv = 2, 128, 256, 128, 128

    key = jax.random.PRNGKey(0)
    kq, kk, kv_key, kd = jax.random.split(key, 4)
    q = jax.random.normal(kq, (B, Lq, D), dtype=jnp.float32)
    k = jax.random.normal(kk, (B, Lk, D), dtype=jnp.float32)
    v = jax.random.normal(kv_key, (B, Lk, Dv), dtype=jnp.float32)

    # Deterministic inverted-dropout keep mask (nn.Dropout(p=0.4), training),
    # shipped as uint8 {0,1}; the exact 1/KEEP_P scale is applied in-kernel.
    # TODO(synk): on-chip pltpu.prng_seed/prng_random_bits would remove this
    # HBM stream entirely, at the cost of a host-verifiable mask.
    keep = jax.random.bernoulli(kd, KEEP_P, (B, Lq, Lk)).astype(jnp.uint8)

    out = attention_dropout(q, k, v, keep)
    jax.block_until_ready(out)

    # Plain-JAX reference of the same forward pass, mirroring the kernel's
    # matmul precision (bf16 MXU operands, f32 accumulation; f32 softmax math).
    scale = 1.0 / (float(Lk) ** 0.25)
    s_ref = jnp.einsum("bqd,bkd->bqk",
                       (q * scale).astype(jnp.bfloat16), k.astype(jnp.bfloat16),
                       preferred_element_type=jnp.float32)
    p_ref = jax.nn.softmax(s_ref, axis=-1)
    p_drop = p_ref * keep.astype(jnp.float32) * (1.0 / KEEP_P)
    ref = jnp.einsum("bqk,bkd->bqd",
                     p_drop.astype(jnp.bfloat16), v.astype(jnp.bfloat16),
                     preferred_element_type=jnp.float32)

    assert out.shape == (B, Lq, Dv), out.shape
    assert bool(jnp.all(jnp.isfinite(out)))
    assert bool(jnp.allclose(out, ref, atol=2e-2, rtol=2e-2)), float(
        jnp.max(jnp.abs(out - ref)))
    print("KERNEL_OK")
</pallas_src>

<mosaic_0001>
module attributes {stable_mosaic.version = 11 : i64} {
  func.func @_flash_attn_dropout_kernel(%arg0: i32, %arg1: i32, %arg2: memref<1x128x128xf32, #tpu.memory_space<vmem>>, %arg3: memref<1x256x128xf32, #tpu.memory_space<vmem>>, %arg4: memref<1x256x128xf32, #tpu.memory_space<vmem>>, %arg5: memref<1x128x256xi8, #tpu.memory_space<vmem>>, %arg6: memref<1x128x128xf32, #tpu.memory_space<vmem>>, %arg7: memref<1x128x1xf32, #tpu.memory_space<vmem>>, %arg8: memref<1x128x1xf32, #tpu.memory_space<vmem>>, %arg9: memref<1x128x128xf32, #tpu.memory_space<vmem>>) attributes {dimension_semantics = [#tpu.dimension_semantics<parallel>, #tpu.dimension_semantics<arbitrary>], iteration_bounds = array<i64: 2, 1>, scalar_prefetch = 0 : i64, scratch_operands = 3 : i64, tpu.core_type = #tpu.core_type<tc>, window_params = [{transform_indices = @transform_0, window_bounds = array<i64: 1, 128, 128>}, {transform_indices = @transform_1, window_bounds = array<i64: 1, 256, 128>}, {transform_indices = @transform_2, window_bounds = array<i64: 1, 256, 128>}, {transform_indices = @transform_3, window_bounds = array<i64: 1, 128, 256>}, {transform_indices = @transform_4, window_bounds = array<i64: 1, 128, 128>}]} {
    %c0_i32 = arith.constant 0 : i32
    %0 = arith.cmpi eq, %arg1, %c0_i32 : i32
    %1 = arith.extui %0 : i1 to i32
    %c0_i32_0 = arith.constant 0 : i32
    %2 = arith.cmpi ne, %1, %c0_i32_0 : i32
    scf.if %2 {
      %cst_36 = arith.constant 0xFF800000 : f32
      %41 = vector.broadcast %cst_36 : f32 to vector<1x128x1xf32>
      %c0_37 = arith.constant 0 : index
      %c0_38 = arith.constant 0 : index
      %c0_39 = arith.constant 0 : index
      %42 = vector.load %arg7[%c0_37, %c0_38, %c0_39] : memref<1x128x1xf32, #tpu.memory_space<vmem>>, vector<1x128x1xf32>
      tpu.vector_store %arg7[%c0_37, %c0_38, %c0_39], %41 {strides = array<i32>} : memref<1x128x1xf32, #tpu.memory_space<vmem>>, vector<1x128x1xf32>,
      %cst_40 = arith.constant 0.000000e+00 : f32
      %43 = vector.broadcast %cst_40 : f32 to vector<1x128x1xf32>
      %c0_41 = arith.constant 0 : index
      %c0_42 = arith.constant 0 : index
      %c0_43 = arith.constant 0 : index
      %44 = vector.load %arg8[%c0_41, %c0_42, %c0_43] : memref<1x128x1xf32, #tpu.memory_space<vmem>>, vector<1x128x1xf32>
      tpu.vector_store %arg8[%c0_41, %c0_42, %c0_43], %43 {strides = array<i32>} : memref<1x128x1xf32, #tpu.memory_space<vmem>>, vector<1x128x1xf32>,
      %cst_44 = arith.constant 0.000000e+00 : f32
      %45 = vector.broadcast %cst_44 : f32 to vector<1x128x128xf32>
      %c0_45 = arith.constant 0 : index
      %c0_46 = arith.constant 0 : index
      %c0_47 = arith.constant 0 : index
      %46 = vector.load %arg9[%c0_45, %c0_46, %c0_47] : memref<1x128x128xf32, #tpu.memory_space<vmem>>, vector<1x128x128xf32>
      tpu.vector_store %arg9[%c0_45, %c0_46, %c0_47], %45 {strides = array<i32>} : memref<1x128x128xf32, #tpu.memory_space<vmem>>, vector<1x128x128xf32>,
    } else {
    }
    %c0 = arith.constant 0 : index
    %c0_1 = arith.constant 0 : index
    %c0_2 = arith.constant 0 : index
    %3 = vector.load %arg2[%c0, %c0_1, %c0_2] : memref<1x128x128xf32, #tpu.memory_space<vmem>>, vector<1x128x128xf32>
    %cst = arith.constant 2.500000e-01 : f32
    %4 = vector.broadcast %cst : f32 to vector<1x128x128xf32>
    %5 = arith.mulf %3, %4 : vector<1x128x128xf32>
    %6 = arith.truncf %5 : vector<1x128x128xf32> to vector<1x128x128xbf16>
    %c0_3 = arith.constant 0 : index
    %c0_4 = arith.constant 0 : index
    %c0_5 = arith.constant 0 : index
    %7 = vector.load %arg3[%c0_3, %c0_4, %c0_5] : memref<1x256x128xf32, #tpu.memory_space<vmem>>, vector<1x256x128xf32>
    %8 = arith.truncf %7 : vector<1x256x128xf32> to vector<1x256x128xbf16>
    "tpu.trace_start"() <{level = 10 : i32, message = "bqd,bkd->bqk"}> : () -> ()
    %cst_6 = arith.constant dense<0.000000e+00> : vector<1x128x256xf32>
    %9 = tpu.matmul %6, %8, %cst_6 {dimension_numbers = #tpu.dot_dimension_numbers<[2], [2], [1], [1], [0, 0, 0, 1, 1, 1], [0], [0]>} : vector<1x128x128xbf16>, vector<1x256x128xbf16>, vector<1x128x256xf32> -> vector<1x128x256xf32>
    "tpu.trace_stop"() : () -> ()
    %c0_7 = arith.constant 0 : index
    %c0_8 = arith.constant 0 : index
    %c0_9 = arith.constant 0 : index
    %10 = vector.load %arg7[%c0_7, %c0_8, %c0_9] : memref<1x128x1xf32, #tpu.memory_space<vmem>>, vector<1x128x1xf32>
    %cst_10 = arith.constant dense<0xFF800000> : vector<1x128xf32>
    %11 = vector.multi_reduction <maximumf>, %9, %cst_10 [2] : vector<1x128x256xf32> to vector<1x128xf32>
    %12 = vector.shape_cast %11 : vector<1x128xf32> to vector<1x128x1xf32>
    %13 = arith.maximumf %10, %12 : vector<1x128x1xf32>
    %14 = arith.subf %10, %13 : vector<1x128x1xf32>
    %15 = math.exp %14 : vector<1x128x1xf32>
    %16 = vector.broadcast %13 : vector<1x128x1xf32> to vector<1x128x256xf32>
    %17 = arith.subf %9, %16 : vector<1x128x256xf32>
    %18 = math.exp %17 : vector<1x128x256xf32>
    %c0_11 = arith.constant 0 : index
    %c0_12 = arith.constant 0 : index
    %c0_13 = arith.constant 0 : index
    %19 = vector.load %arg8[%c0_11, %c0_12, %c0_13] : memref<1x128x1xf32, #tpu.memory_space<vmem>>, vector<1x128x1xf32>
    %20 = arith.mulf %15, %19 : vector<1x128x1xf32>
    %cst_14 = arith.constant dense<0.000000e+00> : vector<1x128xf32>
    %21 = vector.multi_reduction <add>, %18, %cst_14 [2] : vector<1x128x256xf32> to vector<1x128xf32>
    %22 = vector.shape_cast %21 : vector<1x128xf32> to vector<1x128x1xf32>
    %23 = arith.addf %20, %22 : vector<1x128x1xf32>
    %c0_15 = arith.constant 0 : index
    %c0_16 = arith.constant 0 : index
    %c0_17 = arith.constant 0 : index
    %24 = vector.load %arg8[%c0_15, %c0_16, %c0_17] : memref<1x128x1xf32, #tpu.memory_space<vmem>>, vector<1x128x1xf32>
    tpu.vector_store %arg8[%c0_15, %c0_16, %c0_17], %23 {strides = array<i32>} : memref<1x128x1xf32, #tpu.memory_space<vmem>>, vector<1x128x1xf32>,
    %c0_18 = arith.constant 0 : index
    %c0_19 = arith.constant 0 : index
    %c0_20 = arith.constant 0 : index
    %25 = vector.load %arg5[%c0_18, %c0_19, %c0_20] : memref<1x128x256xi8, #tpu.memory_space<vmem>>, vector<1x128x256xi8>
    %26 = arith.uitofp %25 : vector<1x128x256xi8> to vector<1x128x256xf32>
    %27 = arith.mulf %18, %26 : vector<1x128x256xf32>
    %28 = arith.truncf %27 : vector<1x128x256xf32> to vector<1x128x256xbf16>
    %c0_21 = arith.constant 0 : index
    %c0_22 = arith.constant 0 : index
    %c0_23 = arith.constant 0 : index
    %29 = vector.load %arg4[%c0_21, %c0_22, %c0_23] : memref<1x256x128xf32, #tpu.memory_space<vmem>>, vector<1x256x128xf32>
    %30 = arith.truncf %29 : vector<1x256x128xf32> to vector<1x256x128xbf16>
    %c0_24 = arith.constant 0 : index
    %c0_25 = arith.constant 0 : index
    %c0_26 = arith.constant 0 : index
    %31 = vector.load %arg9[%c0_24, %c0_25, %c0_26] : memref<1x128x128xf32, #tpu.memory_space<vmem>>, vector<1x128x128xf32>
    %32 = vector.broadcast %15 : vector<1x128x1xf32> to vector<1x128x128xf32>
    %33 = arith.mulf %32, %31 : vector<1x128x128xf32>
    "tpu.trace_start"() <{level = 10 : i32, message = "bqk,bkd->bqd"}> : () -> ()
    %cst_27 = arith.constant dense<0.000000e+00> : vector<1x128x128xf32>
    %34 = tpu.matmul %28, %30, %cst_27 {dimension_numbers = #tpu.dot_dimension_numbers<[2], [1], [1], [2], [0, 0, 0, 1, 1, 2], [0], [0]>} : vector<1x128x256xbf16>, vector<1x256x128xbf16>, vector<1x128x128xf32> -> vector<1x128x128xf32>
    "tpu.trace_stop"() : () -> ()
    %35 = arith.addf %33, %34 : vector<1x128x128xf32>
    %c0_28 = arith.constant 0 : index
    %c0_29 = arith.constant 0 : index
    %c0_30 = arith.constant 0 : index
    %36 = vector.load %arg9[%c0_28, %c0_29, %c0_30] : memref<1x128x128xf32, #tpu.memory_space<vmem>>, vector<1x128x128xf32>
    tpu.vector_store %arg9[%c0_28, %c0_29, %c0_30], %35 {strides = array<i32>} : memref<1x128x128xf32, #tpu.memory_space<vmem>>, vector<1x128x128xf32>,
    %c0_31 = arith.constant 0 : index
    %c0_32 = arith.constant 0 : index
    %c0_33 = arith.constant 0 : index
    %37 = vector.load %arg7[%c0_31, %c0_32, %c0_33] : memref<1x128x1xf32, #tpu.memory_space<vmem>>, vector<1x128x1xf32>
    tpu.vector_store %arg7[%c0_31, %c0_32, %c0_33], %13 {strides = array<i32>} : memref<1x128x1xf32, #tpu.memory_space<vmem>>, vector<1x128x1xf32>,
    %c0_i32_34 = arith.constant 0 : i32
    %38 = arith.cmpi eq, %arg1, %c0_i32_34 : i32
    %39 = arith.extui %38 : i1 to i32
    %c0_i32_35 = arith.constant 0 : i32
    %40 = arith.cmpi ne, %39, %c0_i32_35 : i32
    scf.if %40 {
      %c0_36 = arith.constant 0 : index
      %c0_37 = arith.constant 0 : index
      %c0_38 = arith.constant 0 : index
      %41 = vector.load %arg8[%c0_36, %c0_37, %c0_38] : memref<1x128x1xf32, #tpu.memory_space<vmem>>, vector<1x128x1xf32>
      %cst_39 = arith.constant 6.000000e-01 : f32
      %42 = vector.broadcast %cst_39 : f32 to vector<1x128x1xf32>
      %43 = arith.mulf %41, %42 : vector<1x128x1xf32>
      %44 = tpu.reciprocal %43 {approx = true} : vector<1x128x1xf32> -> vector<1x128x1xf32>
      %c0_40 = arith.constant 0 : index
      %c0_41 = arith.constant 0 : index
      %c0_42 = arith.constant 0 : index
      %45 = vector.load %arg9[%c0_40, %c0_41, %c0_42] : memref<1x128x128xf32, #tpu.memory_space<vmem>>, vector<1x128x128xf32>
      %46 = vector.broadcast %44 : vector<1x128x1xf32> to vector<1x128x128xf32>
      %47 = arith.mulf %45, %46 : vector<1x128x128xf32>
      %c0_43 = arith.constant 0 : index
      %c0_44 = arith.constant 0 : index
      %c0_45 = arith.constant 0 : index
      %48 = vector.load %arg6[%c0_43, %c0_44, %c0_45] : memref<1x128x128xf32, #tpu.memory_space<vmem>>, vector<1x128x128xf32>
      tpu.vector_store %arg6[%c0_43, %c0_44, %c0_45], %47 {strides = array<i32>} : memref<1x128x128xf32, #tpu.memory_space<vmem>>, vector<1x128x128xf32>,
    } else {
    }
    return
  }
  func.func @transform_0(%arg0: i32, %arg1: i32) -> (i32, i32, i32) {
    %c0_i32 = arith.constant 0 : i32
    %c0_i32_0 = arith.constant 0 : i32
    %c0_i32_1 = arith.constant 0 : i32
    return %arg0, %c0_i32, %c0_i32_0 : i32, i32, i32
  }
  func.func @transform_1(%arg0: i32, %arg1: i32) -> (i32, i32, i32) {
    %c0_i32 = arith.constant 0 : i32
    %c0_i32_0 = arith.constant 0 : i32
    return %arg0, %arg1, %c0_i32 : i32, i32, i32
  }
  func.func @transform_2(%arg0: i32, %arg1: i32) -> (i32, i32, i32) {
    %c0_i32 = arith.constant 0 : i32
    %c0_i32_0 = arith.constant 0 : i32
    return %arg0, %arg1, %c0_i32 : i32, i32, i32
  }
  func.func @transform_3(%arg0: i32, %arg1: i32) -> (i32, i32, i32) {
    %c0_i32 = arith.constant 0 : i32
    %c0_i32_0 = arith.constant 0 : i32
    return %arg0, %c0_i32, %arg1 : i32, i32, i32
  }
  func.func @transform_4(%arg0: i32, %arg1: i32) -> (i32, i32, i32) {
    %c0_i32 = arith.constant 0 : i32
    %c0_i32_0 = arith.constant 0 : i32
    %c0_i32_1 = arith.constant 0 : i32
    return %arg0, %c0_i32, %c0_i32_0 : i32, i32, i32
  }
}

</mosaic_0001>

<llo_original>
// kernel: tpu_custom_call.1
$region0: #{tpu_custom_call.1}
  #allocation0 [shape = 'u32[]', space=smem, size = 0x4, offset = 0x4, fixed_abs, tag = 'smem constant byte address 0x4 - core index']
  #allocation1 [shape = 'u32[72,128]{1,0:T(1,128)}', space=vmem, size = 0x9000, scoped, tag = 'internal scratch']
  #allocation2 [shape = 'f32[1,128,1]{2,1,0:T(8,128)}', space=vmem, size = 0x10000, scoped, tag = 'scratch operand']
  #allocation3 [shape = 'f32[1,128,1]{2,1,0:T(8,128)}', space=vmem, size = 0x10000, scoped, tag = 'scratch operand']
  #allocation4 [shape = 'f32[1,128,128]{2,1,0:T(8,128)}', space=vmem, size = 0x10000, scoped, tag = 'scratch operand']
  %s0 = inlined_call_operand.hbm [shape: f32[2,128,128], index: 0, kind: input, shape index: {}]
  %s1 = inlined_call_operand.hbm [shape: f32[2,256,128], index: 1, kind: input, shape index: {}]
  %s2 = inlined_call_operand.hbm [shape: f32[2,256,128], index: 2, kind: input, shape index: {}]
  %s3 = inlined_call_operand.hbm [shape: u8[2,128,256], index: 3, kind: input, shape index: {}]
  %s4 = inlined_call_operand.hbm [shape: f32[2,128,128], index: 4, kind: output, shape index: {}]
  %s5 = sld [smem:[#allocation0]]
  $region73: #{tpu_custom_call.1} parent=0
    _
  %s7 = ssub.s32 1, %s5
  %s8 = scalar_select 0, %s7, %s5
  $region1: #{tpu_custom_call.1} parent=0
    #allocation5 [shape = 'u8[131072]{0}', space=vmem, size = 0x20000, scoped, tag = 'input window, operand 0']
    #allocation6 [shape = 's32[2]{0}', space=sflag, size = 0x8, scoped, tag = 'scoped memory for tpu_custom_call.1']
    #allocation7 [shape = 's32[2]{0}', space=sflag, size = 0x8, scoped, tag = 'scoped memory for tpu_custom_call.1']
    #allocation8 [shape = 'u8[262144]{0}', space=vmem, size = 0x40000, scoped, tag = 'input window, operand 1']
    #allocation9 [shape = 's32[2]{0}', space=sflag, size = 0x8, scoped, tag = 'scoped memory for tpu_custom_call.1']
    #allocation10 [shape = 'u8[262144]{0}', space=vmem, size = 0x40000, scoped, tag = 'input window, operand 2']
    #allocation11 [shape = 'u8[65536]{0}', space=vmem, size = 0x10000, scoped, tag = 'input window, operand 3']
    #allocation12 [shape = 's32[2]{0}', space=sflag, size = 0x8, scoped, tag = 'scoped memory for tpu_custom_call.1']
    #allocation13 [shape = 'u8[131072]{0}', space=vmem, size = 0x20000, scoped, tag = 'output window, operand 0']
    %9 = vsyncpa [#allocation6], 0
    %s10 = scalar_lea.sflag [#allocation6], 1
    %11 = vsyncpa %s10, 0
    %12 = vsyncpa [#allocation9], 0
    %s13 = scalar_lea.sflag [#allocation9], 1
    %14 = vsyncpa %s13, 0
    %15 = vsyncpa [#allocation12], 0
    %s16 = scalar_lea.sflag [#allocation12], 1
    %17 = vsyncpa %s16, 0
    %18 = vsyncpa [#allocation7], 0
    %s19 = scalar_lea.sflag [#allocation7], 1
    %20 = vsyncpa %s19, 0
    loop: start=0, step=1, limit=4
    $region2: #{tpu_custom_call.1} parent=1 // loop_pre_header
      _
    $region3: #{tpu_custom_call.1} parent=1 // loop_header
      %s22 = sphi 0, %s26
      %p23 = scmp.ge.s32.totalorder %s22, 4
      %s29 = sphi 0, %s41
      %s30 = sphi 0, %s37
      %s31 = sphi 0, %s29
      %s32 = sphi 0, %s30
      %s33 = sphi 0, %s31
      %s34 = sphi 0, %s32
      %s44 = sphi 0, %s46
      %s47 = sphi 0, %s44
      %s48 = sphi 0, %s47
      %s64 = sphi 0, %s48
      %s72 = sphi 0, %s74
      %s75 = sphi 0, %s72
      %s76 = sphi 0, %s75
      %s92 = sphi 0, %s76
      %s100 = sphi 0, %s102
      %s103 = sphi 0, %s100
      %s104 = sphi 0, %s103
      %s120 = sphi 0, %s104
      %s128 = sphi 0, %s130
      %s131 = sphi 0, %s128
      %s132 = sphi 0, %s131
      %s148 = sphi 0, %s132
      %s154 = sphi 0, %s156
      %s157 = sphi 0, %s154
      %s158 = sphi 0, %s157
      %s174 = sphi 0, %s158
    $region4: #{tpu_custom_call.1} parent=1 // loop_header_branch
      %25 = sbr.rel (%p23) target = $region8
    $region5: #{tpu_custom_call.1} parent=1 // loop_body
      %s27 = ssub.s32 %s22, 1
      %s28 = ssub.s32 %s22, 2
      %s35 = sadd.s32 1, %s30
      %p36 = scmp.ge.s32.totalorder %s35, 1
      %s37 = scalar_select %p36, 0, %s35
      %s38 = sadd.s32 1, %s29
      %s39 = scalar_select %p36, %s38, %s29
      %p40 = scmp.ge.s32.totalorder %s39, 2
      %s41 = scalar_select %p40, 0, %s39
      %s42 = ssub.s32 %s29, %s41
      %p43 = scmp.eq.s32.totalorder %s42, 0
      %s45 = sadd.s32 %s44, 1
      %s46 = scalar_select %p43, %s44, %s45
      %p49 = pneg %p43
      %p50 = scmp.eq.s32.totalorder %s22, 1
      %p51 = por %p49, %p50
      %p52 = scmp.ne.s32.totalorder %s44, %s47
      %p53 = scmp.eq.s32.totalorder %s22, 0
      %p54 = por %p52, %p53
      %p55 = scmp.ne.s32.totalorder %s44, %s47
      %p56 = scmp.eq.s32.totalorder %s27, 1
      %p57 = por %p55, %p56
      %p58 = scmp.ne.s32.totalorder %s47, %s48
      %p59 = scmp.eq.s32.totalorder %s27, 0
      %p60 = por %p58, %p59
      %p61 = scmp.ne.s32.totalorder %s47, %s48
      %p62 = scmp.eq.s32.totalorder %s28, 1
      %p63 = por %p61, %p62
      %p65 = scmp.ne.s32.totalorder %s48, %s64
      %p66 = scmp.eq.s32.totalorder %s28, 0
      %p67 = por %p65, %p66
      %s68 = ssub.s32 %s29, %s41
      %s69 = ssub.s32 %s30, %s37
      %s70 = sor.u32 %s68, %s69
      %p71 = scmp.eq.s32.totalorder %s70, 0
      %s73 = sadd.s32 %s72, 1
      %s74 = scalar_select %p71, %s72, %s73
      %p77 = pneg %p71
      %p78 = scmp.eq.s32.totalorder %s22, 1
      %p79 = por %p77, %p78
      %p80 = scmp.ne.s32.totalorder %s72, %s75
      %p81 = scmp.eq.s32.totalorder %s22, 0
      %p82 = por %p80, %p81
      %p83 = scmp.ne.s32.totalorder %s72, %s75
      %p84 = scmp.eq.s32.totalorder %s27, 1
      %p85 = por %p83, %p84
      %p86 = scmp.ne.s32.totalorder %s75, %s76
      %p87 = scmp.eq.s32.totalorder %s27, 0
      %p88 = por %p86, %p87
      %p89 = scmp.ne.s32.totalorder %s75, %s76
      %p90 = scmp.eq.s32.totalorder %s28, 1
      %p91 = por %p89, %p90
      %p93 = scmp.ne.s32.totalorder %s76, %s92
      %p94 = scmp.eq.s32.totalorder %s28, 0
      %p95 = por %p93, %p94
      %s96 = ssub.s32 %s29, %s41
      %s97 = ssub.s32 %s30, %s37
      %s98 = sor.u32 %s96, %s97
      %p99 = scmp.eq.s32.totalorder %s98, 0
      %s101 = sadd.s32 %s100, 1
      %s102 = scalar_select %p99, %s100, %s101
      %p105 = pneg %p99
      %p106 = scmp.eq.s32.totalorder %s22, 1
      %p107 = por %p105, %p106
      %p108 = scmp.ne.s32.totalorder %s100, %s103
      %p109 = scmp.eq.s32.totalorder %s22, 0
      %p110 = por %p108, %p109
      %p111 = scmp.ne.s32.totalorder %s100, %s103
      %p112 = scmp.eq.s32.totalorder %s27, 1
      %p113 = por %p111, %p112
      %p114 = scmp.ne.s32.totalorder %s103, %s104
      %p115 = scmp.eq.s32.totalorder %s27, 0
      %p116 = por %p114, %p115
      %p117 = scmp.ne.s32.totalorder %s103, %s104
      %p118 = scmp.eq.s32.totalorder %s28, 1
      %p119 = por %p117, %p118
      %p121 = scmp.ne.s32.totalorder %s104, %s120
      %p122 = scmp.eq.s32.totalorder %s28, 0
      %p123 = por %p121, %p122
      %s124 = ssub.s32 %s29, %s41
      %s125 = ssub.s32 %s30, %s37
      %s126 = sor.u32 %s124, %s125
      %p127 = scmp.eq.s32.totalorder %s126, 0
      %s129 = sadd.s32 %s128, 1
      %s130 = scalar_select %p127, %s128, %s129
      %p133 = pneg %p127
      %p134 = scmp.eq.s32.totalorder %s22, 1
      %p135 = por %p133, %p134
      %p136 = scmp.ne.s32.totalorder %s128, %s131
      %p137 = scmp.eq.s32.totalorder %s22, 0
      %p138 = por %p136, %p137
      %p139 = scmp.ne.s32.totalorder %s128, %s131
      %p140 = scmp.eq.s32.totalorder %s27, 1
      %p141 = por %p139, %p140
      %p142 = scmp.ne.s32.totalorder %s131, %s132
      %p143 = scmp.eq.s32.totalorder %s27, 0
      %p144 = por %p142, %p143
      %p145 = scmp.ne.s32.totalorder %s131, %s132
      %p146 = scmp.eq.s32.totalorder %s28, 1
      %p147 = por %p145, %p146
      %p149 = scmp.ne.s32.totalorder %s132, %s148
      %p150 = scmp.eq.s32.totalorder %s28, 0
      %p151 = por %p149, %p150
      %s152 = ssub.s32 %s29, %s41
      %p153 = scmp.eq.s32.totalorder %s152, 0
      %s155 = sadd.s32 %s154, 1
      %s156 = scalar_select %p153, %s154, %s155
      %p159 = pneg %p153
      %p160 = scmp.eq.s32.totalorder %s22, 1
      %p161 = por %p159, %p160
      %p162 = scmp.ne.s32.totalorder %s154, %s157
      %p163 = scmp.eq.s32.totalorder %s22, 0
      %p164 = por %p162, %p163
      %p165 = scmp.ne.s32.totalorder %s154, %s157
      %p166 = scmp.eq.s32.totalorder %s27, 1
      %p167 = por %p165, %p166
      %p168 = scmp.ne.s32.totalorder %s157, %s158
      %p169 = scmp.eq.s32.totalorder %s27, 0
      %p170 = por %p168, %p169
      %p171 = scmp.ne.s32.totalorder %s157, %s158
      %p172 = scmp.eq.s32.totalorder %s28, 1
      %p173 = por %p171, %p172
      %p175 = scmp.ne.s32.totalorder %s158, %s174
      %p176 = scmp.eq.s32.totalorder %s28, 0
      %p177 = por %p175, %p176
      %p178 = scmp.le.s32.totalorder 1, %s22
      %p179 = scmp.lt.s32.totalorder %s22, 3
      %p180 = pnand %p178, %p179
      %p181 = pneg %p180
      // Predicated region
      $region9: #{tpu_custom_call.1} parent=5 // pred_check
        _
      $region10: #{tpu_custom_call.1} parent=5 // pred_check_branch
        %183 = sbr.rel (%p180) target = $region12
      $region11: #{tpu_custom_call.1} parent=5 // pred_region
        %s184 = ssub.s32 %s22, 1
      $region12: #{tpu_custom_call.1} parent=5 // pred_fallthru
        _
      %p185 = scmp.lt.s32.totalorder %s22, 2
      // Predicated region
      $region13: #{tpu_custom_call.1} parent=5 // pred_check
        %p186 = pneg %p185
      $region14: #{tpu_custom_call.1} parent=5 // pred_check_branch
        %188 = sbr.rel (%p186) target = $region16
      $region15: #{tpu_custom_call.1} parent=5 // pred_region
        // Predicated region
        $region17: #{tpu_custom_call.1} parent=15 // pred_check
          %p189 = pneg %p54
        $region18: #{tpu_custom_call.1} parent=15 // pred_check_branch
          %191 = sbr.rel (%p189) target = $region20
        $region19: #{tpu_custom_call.1} parent=15 // pred_region
          %s192 = sand.u32 %s44, 1
          %s193 = scalar_lea.sflag [#allocation6], %s192
          %s194 = sand.u32 %s44, 1
          %s195 = smul.addr %s194, 128
          %s196 = scalar_lea.vmem [#allocation5], %s195
          %198 = vsyncadd %s193, 0
          %s199 = smul.addr %s29, 16
          %s200 = smul.addr %s199, 8
          %s201 = scalar_lea.hbm %s0, %s200
          %s202 = sshll.u32 %s201, 4
          %s203 = int_to_ptr.hbm [resolvable:$true] %s202
          %s204 = sshll.u32 %s196, 4
          %s205 = int_to_ptr.vmem [resolvable:$true] %s204
          %210 = dma.hbm_to_vmem [thread:$0]  %s203, 2048, %s205, %s193, 128, 128, 8
        $region20: #{tpu_custom_call.1} parent=15 // pred_fallthru
          _
        // Predicated region
        $region21: #{tpu_custom_call.1} parent=15 // pred_check
          %p211 = pneg %p82
        $region22: #{tpu_custom_call.1} parent=15 // pred_check_branch
          %213 = sbr.rel (%p211) target = $region24
        $region23: #{tpu_custom_call.1} parent=15 // pred_region
          %s214 = sand.u32 %s22, 1
          %s215 = scalar_lea.sflag [#allocation9], %s214
          %s216 = sand.u32 %s72, 1
          %s217 = smul.addr %s216, 256
          %s218 = scalar_lea.vmem [#allocation8], %s217
          %s219 = smul.u32 32, %s30
          %221 = vsyncadd %s215, 0
          %s222 = smul.addr %s29, 32
          %s223 = sadd.s32 %s219, %s222
          %s224 = smul.addr %s223, 8
          %s225 = scalar_lea.hbm %s1, %s224
          %s226 = sshll.u32 %s225, 4
          %s227 = int_to_ptr.hbm [resolvable:$true] %s226
          %s228 = sshll.u32 %s218, 4
          %s229 = int_to_ptr.vmem [resolvable:$true] %s228
          %234 = dma.hbm_to_vmem [thread:$0]  %s227, 4096, %s229, %s215, 128, 128, 8
        $region24: #{tpu_custom_call.1} parent=15 // pred_fallthru
          _
        // Predicated region
        $region25: #{tpu_custom_call.1} parent=15 // pred_check
          %p235 = pneg %p110
        $region26: #{tpu_custom_call.1} parent=15 // pred_check_branch
          %237 = sbr.rel (%p235) target = $region28
        $region27: #{tpu_custom_call.1} parent=15 // pred_region
          %s238 = sand.u32 %s22, 1
          %s239 = scalar_lea.sflag [#allocation9], %s238
          %s240 = sand.u32 %s100, 1
          %s241 = smul.addr %s240, 256
          %s242 = scalar_lea.vmem [#allocation10], %s241
          %s243 = smul.u32 32, %s30
          %245 = vsyncadd %s239, 0
          %s246 = smul.addr %s29, 32
          %s247 = sadd.s32 %s243, %s246
          %s248 = smul.addr %s247, 8
          %s249 = scalar_lea.hbm %s2, %s248
          %s250 = sshll.u32 %s249, 4
          %s251 = int_to_ptr.hbm [resolvable:$true] %s250
          %s252 = sshll.u32 %s242, 4
          %s253 = int_to_ptr.vmem [resolvable:$true] %s252
          %258 = dma.hbm_to_vmem [thread:$0]  %s251, 4096, %s253, %s239, 128, 128, 8
        $region28: #{tpu_custom_call.1} parent=15 // pred_fallthru
          _
        // Predicated region
        $region29: #{tpu_custom_call.1} parent=15 // pred_check
          %p259 = pneg %p138
        $region30: #{tpu_custom_call.1} parent=15 // pred_check_branch
          %261 = sbr.rel (%p259) target = $region32
        $region31: #{tpu_custom_call.1} parent=15 // pred_region
          %s262 = sand.u32 %s128, 1
          %s263 = scalar_lea.sflag [#allocation12], %s262
          %s264 = sand.u32 %s128, 1
          %s265 = smul.addr %s264, 64
          %s266 = scalar_lea.vmem [#allocation11], %s265
          %s267 = smul.u32 2, %s30
          %269 = vsyncadd %s263, 0
          %s270 = smul.addr %s29, 8
          %s271 = sadd.s32 %s267, %s270
          %s272 = smul.addr %s271, 8
          %s273 = scalar_lea.hbm %s3, %s272
          %s274 = sshll.u32 %s273, 4
          %s275 = int_to_ptr.hbm [resolvable:$true] %s274
          %s276 = sshll.u32 %s266, 4
          %s277 = int_to_ptr.vmem [resolvable:$true] %s276
          %282 = dma.hbm_to_vmem [thread:$0]  %s275, 1024, %s277, %s263, 256, 256, 16
        $region32: #{tpu_custom_call.1} parent=15 // pred_fallthru
          _
      $region16: #{tpu_custom_call.1} parent=5 // pred_fallthru
        _
      %p283 = scmp.le.s32.totalorder 1, %s22
      %p284 = scmp.lt.s32.totalorder %s22, 3
      %p285 = pnand %p283, %p284
      %p286 = pneg %p285
      // Predicated region
      $region33: #{tpu_custom_call.1} parent=5 // pred_check
        _
      $region34: #{tpu_custom_call.1} parent=5 // pred_check_branch
        %288 = sbr.rel (%p285) target = $region36
      $region35: #{tpu_custom_call.1} parent=5 // pred_region
        %s289 = ssub.s32 %s22, 1
        %s290 = sand.u32 %s47, 1
        %s291 = scalar_lea.sflag [#allocation6], %s290
        %s292 = sand.u32 %s47, 1
        %s293 = smul.addr %s292, 128
        %s294 = scalar_lea.vmem [#allocation5], %s293
        // Predicated region
        $region37: #{tpu_custom_call.1} parent=35 // pred_check
          %p295 = pneg %p60
        $region38: #{tpu_custom_call.1} parent=35 // pred_check_branch
          %297 = sbr.rel (%p295) target = $region40
        $region39: #{tpu_custom_call.1} parent=35 // pred_region
          %299 = dma.done %s291, 2048
        $region40: #{tpu_custom_call.1} parent=35 // pred_fallthru
          _
        %s300 = sand.u32 %s27, 1
        %s301 = scalar_lea.sflag [#allocation9], %s300
        %s302 = sand.u32 %s75, 1
        %s303 = smul.addr %s302, 256
        %s304 = scalar_lea.vmem [#allocation8], %s303
        // Predicated region
        $region41: #{tpu_custom_call.1} parent=35 // pred_check
          %p305 = pneg %p88
        $region42: #{tpu_custom_call.1} parent=35 // pred_check_branch
          %307 = sbr.rel (%p305) target = $region44
        $region43: #{tpu_custom_call.1} parent=35 // pred_region
          %309 = dma.done %s301, 4096
        $region44: #{tpu_custom_call.1} parent=35 // pred_fallthru
          _
        %s310 = sand.u32 %s27, 1
        %s311 = scalar_lea.sflag [#allocation9], %s310
        %s312 = sand.u32 %s103, 1
        %s313 = smul.addr %s312, 256
        %s314 = scalar_lea.vmem [#allocation10], %s313
        // Predicated region
        $region45: #{tpu_custom_call.1} parent=35 // pred_check
          %p315 = pneg %p116
        $region46: #{tpu_custom_call.1} parent=35 // pred_check_branch
          %317 = sbr.rel (%p315) target = $region48
        $region47: #{tpu_custom_call.1} parent=35 // pred_region
          %319 = dma.done %s311, 4096
        $region48: #{tpu_custom_call.1} parent=35 // pred_fallthru
          _
        %s320 = sand.u32 %s131, 1
        %s321 = scalar_lea.sflag [#allocation12], %s320
        %s322 = sand.u32 %s131, 1
        %s323 = smul.addr %s322, 64
        %s324 = scalar_lea.vmem [#allocation11], %s323
        // Predicated region
        $region49: #{tpu_custom_call.1} parent=35 // pred_check
          %p325 = pneg %p144
        $region50: #{tpu_custom_call.1} parent=35 // pred_check_branch
          %327 = sbr.rel (%p325) target = $region52
        $region51: #{tpu_custom_call.1} parent=35 // pred_region
          %329 = dma.done %s321, 1024
        $region52: #{tpu_custom_call.1} parent=35 // pred_fallthru
          _
        %s330 = sand.u32 %s47, 1
        %s331 = scalar_lea.sflag [#allocation6], %s330
        %s332 = sand.u32 %s47, 1
        %s333 = smul.addr %s332, 128
        %s334 = scalar_lea.vmem [#allocation5], %s333
        %p335 = pneg %p60
        %p336 = pneg %p57
        %s337 = sand.u32 %s27, 1
        %s338 = scalar_lea.sflag [#allocation9], %s337
        %s339 = sand.u32 %s75, 1
        %s340 = smul.addr %s339, 256
        %s341 = scalar_lea.vmem [#allocation8], %s340
        %p342 = pneg %p88
        %p343 = pneg %p85
        %s344 = sand.u32 %s27, 1
        %s345 = scalar_lea.sflag [#allocation9], %s344
        %s346 = sand.u32 %s103, 1
        %s347 = smul.addr %s346, 256
        %s348 = scalar_lea.vmem [#allocation10], %s347
        %p349 = pneg %p116
        %p350 = pneg %p113
        %s351 = sand.u32 %s131, 1
        %s352 = scalar_lea.sflag [#allocation12], %s351
        %s353 = sand.u32 %s131, 1
        %s354 = smul.addr %s353, 64
        %s355 = scalar_lea.vmem [#allocation11], %s354
        %p356 = pneg %p144
        %p357 = pneg %p141
        %p358 = pneg %p170
        %p359 = pneg %p167
        %s360 = sand.u32 %s157, 1
        %s361 = scalar_lea.sflag [#allocation7], %s360
        %s362 = sand.u32 %s157, 1
        %s363 = smul.addr %s362, 128
        %s364 = scalar_lea.vmem [#allocation13], %s363
        %s365 = smul.u32 32, %s32
        %s366 = smul.u32 32, %s32
        %s367 = smul.u32 2, %s32
        %p368 = scmp.eq.s32.totalorder %s32, 0
        // Predicated region
        $region53: #{tpu_custom_call.1} parent=35 // pred_check
          %p369 = pneg %p368
        $region54: #{tpu_custom_call.1} parent=35 // pred_check_branch
          %371 = sbr.rel (%p369) target = $region56
        $region55: #{tpu_custom_call.1} parent=35 // pred_region
          %vm372 = vcmask 7168
          %373 = vst.msk [vmem:[#allocation2] sm:$0xff] %vm372, -inf
          %374 = vst.msk [vmem:[#allocation2 + $0x8] sm:$0xff] %vm372, -inf
          %375 = vst.msk [vmem:[#allocation2 + $0x10] sm:$0xff] %vm372, -inf
          %376 = vst.msk [vmem:[#allocation2 + $0x18] sm:$0xff] %vm372, -inf
          %377 = vst.msk [vmem:[#allocation2 + $0x20] sm:$0xff] %vm372, -inf
          %378 = vst.msk [vmem:[#allocation2 + $0x28] sm:$0xff] %vm372, -inf
          %379 = vst.msk [vmem:[#allocation2 + $0x30] sm:$0xff] %vm372, -inf
          %380 = vst.msk [vmem:[#allocation2 + $0x38] sm:$0xff] %vm372, -inf
          %381 = vst.msk [vmem:[#allocation2 + $0x40] sm:$0xff] %vm372, -inf
          %382 = vst.msk [vmem:[#allocation2 + $0x48] sm:$0xff] %vm372, -inf
          %383 = vst.msk [vmem:[#allocation2 + $0x50] sm:$0xff] %vm372, -inf
          %384 = vst.msk [vmem:[#allocation2 + $0x58] sm:$0xff] %vm372, -inf
          %385 = vst.msk [vmem:[#allocation2 + $0x60] sm:$0xff] %vm372, -inf
          %386 = vst.msk [vmem:[#allocation2 + $0x68] sm:$0xff] %vm372, -inf
          %387 = vst.msk [vmem:[#allocation2 + $0x70] sm:$0xff] %vm372, -inf
          %388 = vst.msk [vmem:[#allocation2 + $0x78] sm:$0xff] %vm372, -inf
          %389 = vst.msk [vmem:[#allocation3] sm:$0xff] %vm372, 0.0
          %390 = vst.msk [vmem:[#allocation3 + $0x8] sm:$0xff] %vm372, 0.0
          %391 = vst.msk [vmem:[#allocation3 + $0x10] sm:$0xff] %vm372, 0.0
          %392 = vst.msk [vmem:[#allocation3 + $0x18] sm:$0xff] %vm372, 0.0
          %393 = vst.msk [vmem:[#allocation3 + $0x20] sm:$0xff] %vm372, 0.0
          %394 = vst.msk [vmem:[#allocation3 + $0x28] sm:$0xff] %vm372, 0.0
          %395 = vst.msk [vmem:[#allocation3 + $0x30] sm:$0xff] %vm372, 0.0
          %396 = vst.msk [vmem:[#allocation3 + $0x38] sm:$0xff] %vm372, 0.0
          %397 = vst.msk [vmem:[#allocation3 + $0x40] sm:$0xff] %vm372, 0.0
          %398 = vst.msk [vmem:[#allocation3 + $0x48] sm:$0xff] %vm372, 0.0
          %399 = vst.msk [vmem:[#allocation3 + $0x50] sm:$0xff] %vm372, 0.0
          %400 = vst.msk [vmem:[#allocation3 + $0x58] sm:$0xff] %vm372, 0.0
          %401 = vst.msk [vmem:[#allocation3 + $0x60] sm:$0xff] %vm372, 0.0
          %402 = vst.msk [vmem:[#allocation3 + $0x68] sm:$0xff] %vm372, 0.0
          %403 = vst.msk [vmem:[#allocation3 + $0x70] sm:$0xff] %vm372, 0.0
          %404 = vst.msk [vmem:[#allocation3 + $0x78] sm:$0xff] %vm372, 0.0
          %405 = vst [vmem:[#allocation4] sm:$0xff] 0.0
          %406 = vst [vmem:[#allocation4 + $0x8] sm:$0xff] 0.0
          %407 = vst [vmem:[#allocation4 + $0x10] sm:$0xff] 0.0
          %408 = vst [vmem:[#allocation4 + $0x18] sm:$0xff] 0.0
          %409 = vst [vmem:[#allocation4 + $0x20] sm:$0xff] 0.0
          %410 = vst [vmem:[#allocation4 + $0x28] sm:$0xff] 0.0
          %411 = vst [vmem:[#allocation4 + $0x30] sm:$0xff] 0.0
          %412 = vst [vmem:[#allocation4 + $0x38] sm:$0xff] 0.0
          %413 = vst [vmem:[#allocation4 + $0x40] sm:$0xff] 0.0
          %414 = vst [vmem:[#allocation4 + $0x48] sm:$0xff] 0.0
          %415 = vst [vmem:[#allocation4 + $0x50] sm:$0xff] 0.0
          %416 = vst [vmem:[#allocation4 + $0x58] sm:$0xff] 0.0
          %417 = vst [vmem:[#allocation4 + $0x60] sm:$0xff] 0.0
          %418 = vst [vmem:[#allocation4 + $0x68] sm:$0xff] 0.0
          %419 = vst [vmem:[#allocation4 + $0x70] sm:$0xff] 0.0
          %420 = vst [vmem:[#allocation4 + $0x78] sm:$0xff] 0.0
        $region56: #{tpu_custom_call.1} parent=35 // pred_fallthru
          _
        %v421 = vld [vmem:[%s294] sm:$0xff]
        %v422 = vld [vmem:[%s294 + $0x8] sm:$0xff]
        %v423 = vld [vmem:[%s294 + $0x10] sm:$0xff]
        %v424 = vld [vmem:[%s294 + $0x18] sm:$0xff]
        %v425 = vld [vmem:[%s294 + $0x20] sm:$0xff]
        %v426 = vld [vmem:[%s294 + $0x28] sm:$0xff]
        %v427 = vld [vmem:[%s294 + $0x30] sm:$0xff]
        %v428 = vld [vmem:[%s294 + $0x38] sm:$0xff]
        %v429 = vld [vmem:[%s294 + $0x40] sm:$0xff]
        %v430 = vld [vmem:[%s294 + $0x48] sm:$0xff]
        %v431 = vld [vmem:[%s294 + $0x50] sm:$0xff]
        %v432 = vld [vmem:[%s294 + $0x58] sm:$0xff]
        %v433 = vld [vmem:[%s294 + $0x60] sm:$0xff]
        %v434 = vld [vmem:[%s294 + $0x68] sm:$0xff]
        %v435 = vld [vmem:[%s294 + $0x70] sm:$0xff]
        %v436 = vld [vmem:[%s294 + $0x78] sm:$0xff]
        %v437 = vmul.f32 %v421, 0.25
        %v438 = vmul.f32 %v422, 0.25
        %v439 = vmul.f32 %v423, 0.25
        %v440 = vmul.f32 %v424, 0.25
        %v441 = vmul.f32 %v425, 0.25
        %v442 = vmul.f32 %v426, 0.25
        %v443 = vmul.f32 %v427, 0.25
        %v444 = vmul.f32 %v428, 0.25
        %v445 = vmul.f32 %v429, 0.25
        %v446 = vmul.f32 %v430, 0.25
        %v447 = vmul.f32 %v431, 0.25
        %v448 = vmul.f32 %v432, 0.25
        %v449 = vmul.f32 %v433, 0.25
        %v450 = vmul.f32 %v434, 0.25
        %v451 = vmul.f32 %v435, 0.25
        %v452 = vmul.f32 %v436, 0.25
        %v453 = vpack.c.bf16 %v437, %v437
        %v454 = vpack.c.bf16 %v438, %v438
        %v455 = vpack.c.bf16 %v439, %v439
        %v456 = vpack.c.bf16 %v440, %v440
        %v457 = vpack.c.bf16 %v441, %v441
        %v458 = vpack.c.bf16 %v442, %v442
        %v459 = vpack.c.bf16 %v443, %v443
        %v460 = vpack.c.bf16 %v444, %v444
        %v461 = vpack.c.bf16 %v445, %v445
        %v462 = vpack.c.bf16 %v446, %v446
        %v463 = vpack.c.bf16 %v447, %v447
        %v464 = vpack.c.bf16 %v448, %v448
        %v465 = vpack.c.bf16 %v449, %v449
        %v466 = vpack.c.bf16 %v450, %v450
        %v467 = vpack.c.bf16 %v451, %v451
        %v468 = vpack.c.bf16 %v452, %v452
        %v469 = vld [vmem:[%s304] sm:$0xff]
        %v470 = vld [vmem:[%s304 + $0x8] sm:$0xff]
        %v471 = vld [vmem:[%s304 + $0x10] sm:$0xff]
        %v472 = vld [vmem:[%s304 + $0x18] sm:$0xff]
        %v473 = vld [vmem:[%s304 + $0x20] sm:$0xff]
        %v474 = vld [vmem:[%s304 + $0x28] sm:$0xff]
        %v475 = vld [vmem:[%s304 + $0x30] sm:$0xff]
        %v476 = vld [vmem:[%s304 + $0x38] sm:$0xff]
        %v477 = vld [vmem:[%s304 + $0x40] sm:$0xff]
        %v478 = vld [vmem:[%s304 + $0x48] sm:$0xff]
        %v479 = vld [vmem:[%s304 + $0x50] sm:$0xff]
        %v480 = vld [vmem:[%s304 + $0x58] sm:$0xff]
        %v481 = vld [vmem:[%s304 + $0x60] sm:$0xff]
        %v482 = vld [vmem:[%s304 + $0x68] sm:$0xff]
        %v483 = vld [vmem:[%s304 + $0x70] sm:$0xff]
        %v484 = vld [vmem:[%s304 + $0x78] sm:$0xff]
        %v485 = vld [vmem:[%s304 + $0x80] sm:$0xff]
        %v486 = vld [vmem:[%s304 + $0x88] sm:$0xff]
        %v487 = vld [vmem:[%s304 + $0x90] sm:$0xff]
        %v488 = vld [vmem:[%s304 + $0x98] sm:$0xff]
        %v489 = vld [vmem:[%s304 + $0xa0] sm:$0xff]
        %v490 = vld [vmem:[%s304 + $0xa8] sm:$0xff]
        %v491 = vld [vmem:[%s304 + $0xb0] sm:$0xff]
        %v492 = vld [vmem:[%s304 + $0xb8] sm:$0xff]
        %v493 = vld [vmem:[%s304 + $0xc0] sm:$0xff]
        %v494 = vld [vmem:[%s304 + $0xc8] sm:$0xff]
        %v495 = vld [vmem:[%s304 + $0xd0] sm:$0xff]
        %v496 = vld [vmem:[%s304 + $0xd8] sm:$0xff]
        %v497 = vld [vmem:[%s304 + $0xe0] sm:$0xff]
        %v498 = vld [vmem:[%s304 + $0xe8] sm:$0xff]
        %v499 = vld [vmem:[%s304 + $0xf0] sm:$0xff]
        %v500 = vld [vmem:[%s304 + $0xf8] sm:$0xff]
        %v501 = vpack.c.bf16 %v469, %v469
        %v502 = vpack.c.bf16 %v470, %v470
        %v503 = vpack.c.bf16 %v471, %v471
        %v504 = vpack.c.bf16 %v472, %v472
        %v505 = vpack.c.bf16 %v473, %v473
        %v506 = vpack.c.bf16 %v474, %v474
        %v507 = vpack.c.bf16 %v475, %v475
        %v508 = vpack.c.bf16 %v476, %v476
        %v509 = vpack.c.bf16 %v477, %v477
        %v510 = vpack.c.bf16 %v478, %v478
        %v511 = vpack.c.bf16 %v479, %v479
        %v512 = vpack.c.bf16 %v480, %v480
        %v513 = vpack.c.bf16 %v481, %v481
        %v514 = vpack.c.bf16 %v482, %v482
        %v515 = vpack.c.bf16 %v483, %v483
        %v516 = vpack.c.bf16 %v484, %v484
        %v517 = vpack.c.bf16 %v485, %v485
        %v518 = vpack.c.bf16 %v486, %v486
        %v519 = vpack.c.bf16 %v487, %v487
        %v520 = vpack.c.bf16 %v488, %v488
        %v521 = vpack.c.bf16 %v489, %v489
        %v522 = vpack.c.bf16 %v490, %v490
        %v523 = vpack.c.bf16 %v491, %v491
        %v524 = vpack.c.bf16 %v492, %v492
        %v525 = vpack.c.bf16 %v493, %v493
        %v526 = vpack.c.bf16 %v494, %v494
        %v527 = vpack.c.bf16 %v495, %v495
        %v528 = vpack.c.bf16 %v496, %v496
        %v529 = vpack.c.bf16 %v497, %v497
        %v530 = vpack.c.bf16 %v498, %v498
        %v531 = vpack.c.bf16 %v499, %v499
        %v532 = vpack.c.bf16 %v500, %v500
        %v549 = vunpack.c.l.b16 %v453
        %v550 = vunpack.c.l.b16 %v454
        %v551 = vunpack.c.l.b16 %v455
        %v552 = vunpack.c.l.b16 %v456
        %v553 = vunpack.c.l.b16 %v457
        %v554 = vunpack.c.l.b16 %v458
        %v555 = vunpack.c.l.b16 %v459
        %v556 = vunpack.c.l.b16 %v460
        %v557 = vunpack.c.l.b16 %v461
        %v558 = vunpack.c.l.b16 %v462
        %v559 = vunpack.c.l.b16 %v463
        %v560 = vunpack.c.l.b16 %v464
        %v561 = vunpack.c.l.b16 %v465
        %v562 = vunpack.c.l.b16 %v466
        %v563 = vunpack.c.l.b16 %v467
        %v564 = vunpack.c.l.b16 %v468
        %v565 = vpack.c.b16 %v550, %v549
        %v566 = vpack.c.b16 %v552, %v551
        %v567 = vpack.c.b16 %v554, %v553
        %v568 = vpack.c.b16 %v556, %v555
        %v569 = vpack.c.b16 %v558, %v557
        %v570 = vpack.c.b16 %v560, %v559
        %v571 = vpack.c.b16 %v562, %v561
        %v572 = vpack.c.b16 %v564, %v563
        %v613 = vunpack.c.l.b16 %v501
        %v614 = vunpack.c.l.b16 %v502
        %v615 = vunpack.c.l.b16 %v503
        %v616 = vunpack.c.l.b16 %v504
        %v617 = vunpack.c.l.b16 %v505
        %v618 = vunpack.c.l.b16 %v506
        %v619 = vunpack.c.l.b16 %v507
        %v620 = vunpack.c.l.b16 %v508
        %v621 = vunpack.c.l.b16 %v509
        %v622 = vunpack.c.l.b16 %v510
        %v623 = vunpack.c.l.b16 %v511
        %v624 = vunpack.c.l.b16 %v512
        %v625 = vunpack.c.l.b16 %v513
        %v626 = vunpack.c.l.b16 %v514
        %v627 = vunpack.c.l.b16 %v515
        %v628 = vunpack.c.l.b16 %v516
        %v629 = vunpack.c.l.b16 %v517
        %v630 = vunpack.c.l.b16 %v518
        %v631 = vunpack.c.l.b16 %v519
        %v632 = vunpack.c.l.b16 %v520
        %v633 = vunpack.c.l.b16 %v521
        %v634 = vunpack.c.l.b16 %v522
        %v635 = vunpack.c.l.b16 %v523
        %v636 = vunpack.c.l.b16 %v524
        %v637 = vunpack.c.l.b16 %v525
        %v638 = vunpack.c.l.b16 %v526
        %v639 = vunpack.c.l.b16 %v527
        %v640 = vunpack.c.l.b16 %v528
        %v641 = vunpack.c.l.b16 %v529
        %v642 = vunpack.c.l.b16 %v530
        %v643 = vunpack.c.l.b16 %v531
        %v644 = vunpack.c.l.b16 %v532
        %v645 = vpack.c.b16 %v614, %v613
        %v646 = vpack.c.b16 %v616, %v615
        %v647 = vpack.c.b16 %v618, %v617
        %v648 = vpack.c.b16 %v620, %v619
        %v649 = vpack.c.b16 %v622, %v621
        %v650 = vpack.c.b16 %v624, %v623
        %v651 = vpack.c.b16 %v626, %v625
        %v652 = vpack.c.b16 %v628, %v627
        %v653 = vpack.c.b16 %v630, %v629
        %v654 = vpack.c.b16 %v632, %v631
        %v655 = vpack.c.b16 %v634, %v633
        %v656 = vpack.c.b16 %v636, %v635
        %v657 = vpack.c.b16 %v638, %v637
        %v658 = vpack.c.b16 %v640, %v639
        %v659 = vpack.c.b16 %v642, %v641
        %v660 = vpack.c.b16 %v644, %v643
        %677 = vmatpush.bf16.xpose.msra.mxu0 %v652
        %678 = vmatpush.bf16.xpose.msra.mxu0 %v651
        %679 = vmatpush.bf16.xpose.msra.mxu0 %v650
        %680 = vmatpush.bf16.xpose.msra.mxu0 %v649
        %681 = vmatpush.bf16.xpose.msra.mxu0 %v648
        %682 = vmatpush.bf16.xpose.msra.mxu0 %v647
        %683 = vmatpush.bf16.xpose.msra.mxu0 %v646
        %684 = vmatpush.bf16.xpose.msra.mxu0 %v645
        %685 = vmatmul.bf16.gmra.mxu0 %v565
        %v686 = vpop.f32.mrf.mxu0
        %v687 = vadd.f32 0.0, %v686
        %v688 = vpop.f32.mrf.mxu0
        %v689 = vadd.f32 0.0, %v688
        %690 = vmatmul.bf16.gmra.mxu0 %v566
        %v691 = vpop.f32.mrf.mxu0
        %v692 = vadd.f32 0.0, %v691
        %v693 = vpop.f32.mrf.mxu0
        %v694 = vadd.f32 0.0, %v693
        %695 = vmatmul.bf16.gmra.mxu0 %v567
        %v696 = vpop.f32.mrf.mxu0
        %v697 = vadd.f32 0.0, %v696
        %v698 = vpop.f32.mrf.mxu0
        %v699 = vadd.f32 0.0, %v698
        %700 = vmatmul.bf16.gmra.mxu0 %v568
        %v701 = vpop.f32.mrf.mxu0
        %v702 = vadd.f32 0.0, %v701
        %v703 = vpop.f32.mrf.mxu0
        %v704 = vadd.f32 0.0, %v703
        %705 = vmatmul.bf16.gmra.mxu0 %v569
        %v706 = vpop.f32.mrf.mxu0
        %v707 = vadd.f32 0.0, %v706
        %v708 = vpop.f32.mrf.mxu0
        %v709 = vadd.f32 0.0, %v708
        %710 = vmatmul.bf16.gmra.mxu0 %v570
        %v711 = vpop.f32.mrf.mxu0
        %v712 = vadd.f32 0.0, %v711
        %v713 = vpop.f32.mrf.mxu0
        %v714 = vadd.f32 0.0, %v713
        %715 = vmatmul.bf16.gmra.mxu0 %v571
        %v716 = vpop.f32.mrf.mxu0
        %v717 = vadd.f32 0.0, %v716
        %v718 = vpop.f32.mrf.mxu0
        %v719 = vadd.f32 0.0, %v718
        %720 = vmatmul.bf16.gmra.mxu0 %v572
        %v721 = vpop.f32.mrf.mxu0
        %v722 = vadd.f32 0.0, %v721
        %v723 = vpop.f32.mrf.mxu0
        %v724 = vadd.f32 0.0, %v723
        %725 = vdwg.mxu0
        %726 = vmatpush.bf16.xpose.msra.mxu0 %v660
        %727 = vmatpush.bf16.xpose.msra.mxu0 %v659
        %728 = vmatpush.bf16.xpose.msra.mxu0 %v658
        %729 = vmatpush.bf16.xpose.msra.mxu0 %v657
        %730 = vmatpush.bf16.xpose.msra.mxu0 %v656
        %731 = vmatpush.bf16.xpose.msra.mxu0 %v655
        %732 = vmatpush.bf16.xpose.msra.mxu0 %v654
        %733 = vmatpush.bf16.xpose.msra.mxu0 %v653
        %734 = vmatmul.bf16.gmra.mxu0 %v565
        %v735 = vpop.f32.mrf.mxu0
        %v736 = vadd.f32 0.0, %v735
        %v737 = vpop.f32.mrf.mxu0
        %v738 = vadd.f32 0.0, %v737
        %739 = vmatmul.bf16.gmra.mxu0 %v566
        %v740 = vpop.f32.mrf.mxu0
        %v741 = vadd.f32 0.0, %v740
        %v742 = vpop.f32.mrf.mxu0
        %v743 = vadd.f32 0.0, %v742
        %744 = vmatmul.bf16.gmra.mxu0 %v567
        %v745 = vpop.f32.mrf.mxu0
        %v746 = vadd.f32 0.0, %v745
        %v747 = vpop.f32.mrf.mxu0
        %v748 = vadd.f32 0.0, %v747
        %749 = vmatmul.bf16.gmra.mxu0 %v568
        %v750 = vpop.f32.mrf.mxu0
        %v751 = vadd.f32 0.0, %v750
        %v752 = vpop.f32.mrf.mxu0
        %v753 = vadd.f32 0.0, %v752
        %754 = vmatmul.bf16.gmra.mxu0 %v569
        %v755 = vpop.f32.mrf.mxu0
        %v756 = vadd.f32 0.0, %v755
        %v757 = vpop.f32.mrf.mxu0
        %v758 = vadd.f32 0.0, %v757
        %759 = vmatmul.bf16.gmra.mxu0 %v570
        %v760 = vpop.f32.mrf.mxu0
        %v761 = vadd.f32 0.0, %v760
        %v762 = vpop.f32.mrf.mxu0
        %v763 = vadd.f32 0.0, %v762
        %764 = vmatmul.bf16.gmra.mxu0 %v571
        %v765 = vpop.f32.mrf.mxu0
        %v766 = vadd.f32 0.0, %v765
        %v767 = vpop.f32.mrf.mxu0
        %v768 = vadd.f32 0.0, %v767
        %769 = vmatmul.bf16.gmra.mxu0 %v572
        %v770 = vpop.f32.mrf.mxu0
        %v771 = vadd.f32 0.0, %v770
        %v772 = vpop.f32.mrf.mxu0
        %v773 = vadd.f32 0.0, %v772
        %774 = vdwg.mxu0
        %v775 = vld [vmem:[#allocation2] sm:$0xff]
        %v776 = vld [vmem:[#allocation2 + $0x8] sm:$0xff]
        %v777 = vld [vmem:[#allocation2 + $0x10] sm:$0xff]
        %v778 = vld [vmem:[#allocation2 + $0x18] sm:$0xff]
        %v779 = vld [vmem:[#allocation2 + $0x20] sm:$0xff]
        %v780 = vld [vmem:[#allocation2 + $0x28] sm:$0xff]
        %v781 = vld [vmem:[#allocation2 + $0x30] sm:$0xff]
        %v782 = vld [vmem:[#allocation2 + $0x38] sm:$0xff]
        %v783 = vld [vmem:[#allocation2 + $0x40] sm:$0xff]
        %v784 = vld [vmem:[#allocation2 + $0x48] sm:$0xff]
        %v785 = vld [vmem:[#allocation2 + $0x50] sm:$0xff]
        %v786 = vld [vmem:[#allocation2 + $0x58] sm:$0xff]
        %v787 = vld [vmem:[#allocation2 + $0x60] sm:$0xff]
        %v788 = vld [vmem:[#allocation2 + $0x68] sm:$0xff]
        %v789 = vld [vmem:[#allocation2 + $0x70] sm:$0xff]
        %v790 = vld [vmem:[#allocation2 + $0x78] sm:$0xff]
        %v791 = vmax.f32 %v687, %v736
        %792 = vmax.xlane.f32.xlu0 %v791
        %v793 = vpop.xlane.xlu0 %792
        %v794 = vmax.f32 %v689, %v738
        %795 = vmax.xlane.f32.xlu0 %v794
        %v796 = vpop.xlane.xlu0 %795
        %v797 = vmax.f32 %v692, %v741
        %798 = vmax.xlane.f32.xlu0 %v797
        %v799 = vpop.xlane.xlu0 %798
        %v800 = vmax.f32 %v694, %v743
        %801 = vmax.xlane.f32.xlu0 %v800
        %v802 = vpop.xlane.xlu0 %801
        %v803 = vmax.f32 %v697, %v746
        %804 = vmax.xlane.f32.xlu0 %v803
        %v805 = vpop.xlane.xlu0 %804
        %v806 = vmax.f32 %v699, %v748
        %807 = vmax.xlane.f32.xlu0 %v806
        %v808 = vpop.xlane.xlu0 %807
        %v809 = vmax.f32 %v702, %v751
        %810 = vmax.xlane.f32.xlu0 %v809
        %v811 = vpop.xlane.xlu0 %810
        %v812 = vmax.f32 %v704, %v753
        %813 = vmax.xlane.f32.xlu0 %v812
        %v814 = vpop.xlane.xlu0 %813
        %v815 = vmax.f32 %v707, %v756
        %816 = vmax.xlane.f32.xlu0 %v815
        %v817 = vpop.xlane.xlu0 %816
        %v818 = vmax.f32 %v709, %v758
        %819 = vmax.xlane.f32.xlu0 %v818
        %v820 = vpop.xlane.xlu0 %819
        %v821 = vmax.f32 %v712, %v761
        %822 = vmax.xlane.f32.xlu0 %v821
        %v823 = vpop.xlane.xlu0 %822
        %v824 = vmax.f32 %v714, %v763
        %825 = vmax.xlane.f32.xlu0 %v824
        %v826 = vpop.xlane.xlu0 %825
        %v827 = vmax.f32 %v717, %v766
        %828 = vmax.xlane.f32.xlu0 %v827
        %v829 = vpop.xlane.xlu0 %828
        %v830 = vmax.f32 %v719, %v768
        %831 = vmax.xlane.f32.xlu0 %v830
        %v832 = vpop.xlane.xlu0 %831
        %v833 = vmax.f32 %v722, %v771
        %834 = vmax.xlane.f32.xlu0 %v833
        %v835 = vpop.xlane.xlu0 %834
        %v836 = vmax.f32 %v724, %v773
        %837 = vmax.xlane.f32.xlu0 %v836
        %v838 = vpop.xlane.xlu0 %837
        %v839 = vmax.f32 %v775, %v793
        %v840 = vmax.f32 %v776, %v796
        %v841 = vmax.f32 %v777, %v799
        %v842 = vmax.f32 %v778, %v802
        %v843 = vmax.f32 %v779, %v805
        %v844 = vmax.f32 %v780, %v808
        %v845 = vmax.f32 %v781, %v811
        %v846 = vmax.f32 %v782, %v814
        %v847 = vmax.f32 %v783, %v817
        %v848 = vmax.f32 %v784, %v820
        %v849 = vmax.f32 %v785, %v823
        %v850 = vmax.f32 %v786, %v826
        %v851 = vmax.f32 %v787, %v829
        %v852 = vmax.f32 %v788, %v832
        %v853 = vmax.f32 %v789, %v835
        %v854 = vmax.f32 %v790, %v838
        %v855 = vsub.f32 %v775, %v839
        %v856 = vsub.f32 %v776, %v840
        %v857 = vsub.f32 %v777, %v841
        %v858 = vsub.f32 %v778, %v842
        %v859 = vsub.f32 %v779, %v843
        %v860 = vsub.f32 %v780, %v844
        %v861 = vsub.f32 %v781, %v845
        %v862 = vsub.f32 %v782, %v846
        %v863 = vsub.f32 %v783, %v847
        %v864 = vsub.f32 %v784, %v848
        %v865 = vsub.f32 %v785, %v849
        %v866 = vsub.f32 %v786, %v850
        %v867 = vsub.f32 %v787, %v851
        %v868 = vsub.f32 %v788, %v852
        %v869 = vsub.f32 %v789, %v853
        %v870 = vsub.f32 %v790, %v854
        %v871 = vmul.f32 %v855, 1.442695
        %v872 = vpow.pop %v871
        %v873 = vmul.f32 %v856, 1.442695
        %v874 = vpow.pop %v873
        %v875 = vmul.f32 %v857, 1.442695
        %v876 = vpow.pop %v875
        %v877 = vmul.f32 %v858, 1.442695
        %v878 = vpow.pop %v877
        %v879 = vmul.f32 %v859, 1.442695
        %v880 = vpow.pop %v879
        %v881 = vmul.f32 %v860, 1.442695
        %v882 = vpow.pop %v881
        %v883 = vmul.f32 %v861, 1.442695
        %v884 = vpow.pop %v883
        %v885 = vmul.f32 %v862, 1.442695
        %v886 = vpow.pop %v885
        %v887 = vmul.f32 %v863, 1.442695
        %v888 = vpow.pop %v887
        %v889 = vmul.f32 %v864, 1.442695
        %v890 = vpow.pop %v889
        %v891 = vmul.f32 %v865, 1.442695
        %v892 = vpow.pop %v891
        %v893 = vmul.f32 %v866, 1.442695
        %v894 = vpow.pop %v893
        %v895 = vmul.f32 %v867, 1.442695
        %v896 = vpow.pop %v895
        %v897 = vmul.f32 %v868, 1.442695
        %v898 = vpow.pop %v897
        %v899 = vmul.f32 %v869, 1.442695
        %v900 = vpow.pop %v899
        %v901 = vmul.f32 %v870, 1.442695
        %v902 = vpow.pop %v901
        %904 = vset.pattern.permute.xlu0 0
        %905 = vperm.xlu0 %904, %v839
        %v906 = vpop.permute.xlu0 %905
        %909 = vset.pattern.permute.xlu0 0
        %910 = vperm.xlu0 %909, %v840
        %v911 = vpop.permute.xlu0 %910
        %914 = vset.pattern.permute.xlu0 0
        %915 = vperm.xlu0 %914, %v841
        %v916 = vpop.permute.xlu0 %915
        %919 = vset.pattern.permute.xlu0 0
        %920 = vperm.xlu0 %919, %v842
        %v921 = vpop.permute.xlu0 %920
        %924 = vset.pattern.permute.xlu0 0
        %925 = vperm.xlu0 %924, %v843
        %v926 = vpop.permute.xlu0 %925
        %929 = vset.pattern.permute.xlu0 0
        %930 = vperm.xlu0 %929, %v844
        %v931 = vpop.permute.xlu0 %930
        %934 = vset.pattern.permute.xlu0 0
        %935 = vperm.xlu0 %934, %v845
        %v936 = vpop.permute.xlu0 %935
        %939 = vset.pattern.permute.xlu0 0
        %940 = vperm.xlu0 %939, %v846
        %v941 = vpop.permute.xlu0 %940
        %944 = vset.pattern.permute.xlu0 0
        %945 = vperm.xlu0 %944, %v847
        %v946 = vpop.permute.xlu0 %945
        %949 = vset.pattern.permute.xlu0 0
        %950 = vperm.xlu0 %949, %v848
        %v951 = vpop.permute.xlu0 %950
        %954 = vset.pattern.permute.xlu0 0
        %955 = vperm.xlu0 %954, %v849
        %v956 = vpop.permute.xlu0 %955
        %959 = vset.pattern.permute.xlu0 0
        %960 = vperm.xlu0 %959, %v850
        %v961 = vpop.permute.xlu0 %960
        %964 = vset.pattern.permute.xlu0 0
        %965 = vperm.xlu0 %964, %v851
        %v966 = vpop.permute.xlu0 %965
        %969 = vset.pattern.permute.xlu0 0
        %970 = vperm.xlu0 %969, %v852
        %v971 = vpop.permute.xlu0 %970
        %974 = vset.pattern.permute.xlu0 0
        %975 = vperm.xlu0 %974, %v853
        %v976 = vpop.permute.xlu0 %975
        %979 = vset.pattern.permute.xlu0 0
        %980 = vperm.xlu0 %979, %v854
        %v981 = vpop.permute.xlu0 %980
        %v983 = vsub.f32 %v687, %v906
        %v984 = vsub.f32 %v736, %v906
        %v985 = vsub.f32 %v689, %v911
        %v986 = vsub.f32 %v738, %v911
        %v987 = vsub.f32 %v692, %v916
        %v988 = vsub.f32 %v741, %v916
        %v989 = vsub.f32 %v694, %v921
        %v990 = vsub.f32 %v743, %v921
        %v991 = vsub.f32 %v697, %v926
        %v992 = vsub.f32 %v746, %v926
        %v993 = vsub.f32 %v699, %v931
        %v994 = vsub.f32 %v748, %v931
        %v995 = vsub.f32 %v702, %v936
        %v996 = vsub.f32 %v751, %v936
        %v997 = vsub.f32 %v704, %v941
        %v998 = vsub.f32 %v753, %v941
        %v999 = vsub.f32 %v707, %v946
        %v1000 = vsub.f32 %v756, %v946
        %v1001 = vsub.f32 %v709, %v951
        %v1002 = vsub.f32 %v758, %v951
        %v1003 = vsub.f32 %v712, %v956
        %v1004 = vsub.f32 %v761, %v956
        %v1005 = vsub.f32 %v714, %v961
        %v1006 = vsub.f32 %v763, %v961
        %v1007 = vsub.f32 %v717, %v966
        %v1008 = vsub.f32 %v766, %v966
        %v1009 = vsub.f32 %v719, %v971
        %v1010 = vsub.f32 %v768, %v971
        %v1011 = vsub.f32 %v722, %v976
        %v1012 = vsub.f32 %v771, %v976
        %v1013 = vsub.f32 %v724, %v981
        %v1014 = vsub.f32 %v773, %v981
        %v1015 = vmul.f32 %v983, 1.442695
        %v1016 = vpow.pop %v1015
        %v1017 = vmul.f32 %v984, 1.442695
        %v1018 = vpow.pop %v1017
        %v1019 = vmul.f32 %v985, 1.442695
        %v1020 = vpow.pop %v1019
        %v1021 = vmul.f32 %v986, 1.442695
        %v1022 = vpow.pop %v1021
        %v1023 = vmul.f32 %v987, 1.442695
        %v1024 = vpow.pop %v1023
        %v1025 = vmul.f32 %v988, 1.442695
        %v1026 = vpow.pop %v1025
        %v1027 = vmul.f32 %v989, 1.442695
        %v1028 = vpow.pop %v1027
        %v1029 = vmul.f32 %v990, 1.442695
        %v1030 = vpow.pop %v1029
        %v1031 = vmul.f32 %v991, 1.442695
        %v1032 = vpow.pop %v1031
        %v1033 = vmul.f32 %v992, 1.442695
        %v1034 = vpow.pop %v1033
        %v1035 = vmul.f32 %v993, 1.442695
        %v1036 = vpow.pop %v1035
        %v1037 = vmul.f32 %v994, 1.442695
        %v1038 = vpow.pop %v1037
        %v1039 = vmul.f32 %v995, 1.442695
        %v1040 = vpow.pop %v1039
        %v1041 = vmul.f32 %v996, 1.442695
        %v1042 = vpow.pop %v1041
        %v1043 = vmul.f32 %v997, 1.442695
        %v1044 = vpow.pop %v1043
        %v1045 = vmul.f32 %v998, 1.442695
        %v1046 = vpow.pop %v1045
        %v1047 = vmul.f32 %v999, 1.442695
        %v1048 = vpow.pop %v1047
        %v1049 = vmul.f32 %v1000, 1.442695
        %v1050 = vpow.pop %v1049
        %v1051 = vmul.f32 %v1001, 1.442695
        %v1052 = vpow.pop %v1051
        %v1053 = vmul.f32 %v1002, 1.442695
        %v1054 = vpow.pop %v1053
        %v1055 = vmul.f32 %v1003, 1.442695
        %v1056 = vpow.pop %v1055
        %v1057 = vmul.f32 %v1004, 1.442695
        %v1058 = vpow.pop %v1057
        %v1059 = vmul.f32 %v1005, 1.442695
        %v1060 = vpow.pop %v1059
        %v1061 = vmul.f32 %v1006, 1.442695
        %v1062 = vpow.pop %v1061
        %v1063 = vmul.f32 %v1007, 1.442695
        %v1064 = vpow.pop %v1063
        %v1065 = vmul.f32 %v1008, 1.442695
        %v1066 = vpow.pop %v1065
        %v1067 = vmul.f32 %v1009, 1.442695
        %v1068 = vpow.pop %v1067
        %v1069 = vmul.f32 %v1010, 1.442695
        %v1070 = vpow.pop %v1069
        %v1071 = vmul.f32 %v1011, 1.442695
        %v1072 = vpow.pop %v1071
        %v1073 = vmul.f32 %v1012, 1.442695
        %v1074 = vpow.pop %v1073
        %v1075 = vmul.f32 %v1013, 1.442695
        %v1076 = vpow.pop %v1075
        %v1077 = vmul.f32 %v1014, 1.442695
        %v1078 = vpow.pop %v1077
        %v1079 = vld [vmem:[#allocation3] sm:$0xff]
        %v1080 = vld [vmem:[#allocation3 + $0x8] sm:$0xff]
        %v1081 = vld [vmem:[#allocation3 + $0x10] sm:$0xff]
        %v1082 = vld [vmem:[#allocation3 + $0x18] sm:$0xff]
        %v1083 = vld [vmem:[#allocation3 + $0x20] sm:$0xff]
        %v1084 = vld [vmem:[#allocation3 + $0x28] sm:$0xff]
        %v1085 = vld [vmem:[#allocation3 + $0x30] sm:$0xff]
        %v1086 = vld [vmem:[#allocation3 + $0x38] sm:$0xff]
        %v1087 = vld [vmem:[#allocation3 + $0x40] sm:$0xff]
        %v1088 = vld [vmem:[#allocation3 + $0x48] sm:$0xff]
        %v1089 = vld [vmem:[#allocation3 + $0x50] sm:$0xff]
        %v1090 = vld [vmem:[#allocation3 + $0x58] sm:$0xff]
        %v1091 = vld [vmem:[#allocation3 + $0x60] sm:$0xff]
        %v1092 = vld [vmem:[#allocation3 + $0x68] sm:$0xff]
        %v1093 = vld [vmem:[#allocation3 + $0x70] sm:$0xff]
        %v1094 = vld [vmem:[#allocation3 + $0x78] sm:$0xff]
        %v1095 = vmul.f32 %v872, %v1079
        %v1096 = vmul.f32 %v874, %v1080
        %v1097 = vmul.f32 %v876, %v1081
        %v1098 = vmul.f32 %v878, %v1082
        %v1099 = vmul.f32 %v880, %v1083
        %v1100 = vmul.f32 %v882, %v1084
        %v1101 = vmul.f32 %v884, %v1085
        %v1102 = vmul.f32 %v886, %v1086
        %v1103 = vmul.f32 %v888, %v1087
        %v1104 = vmul.f32 %v890, %v1088
        %v1105 = vmul.f32 %v892, %v1089
        %v1106 = vmul.f32 %v894, %v1090
        %v1107 = vmul.f32 %v896, %v1091
        %v1108 = vmul.f32 %v898, %v1092
        %v1109 = vmul.f32 %v900, %v1093
        %v1110 = vmul.f32 %v902, %v1094
        %v1111 = vadd.f32 %v1016, %v1018
        %1112 = vadd.xlane.f32.xlu0 %v1111
        %v1113 = vpop.xlane.xlu0 %1112
        %v1114 = vadd.f32 %v1020, %v1022
        %1115 = vadd.xlane.f32.xlu0 %v1114
        %v1116 = vpop.xlane.xlu0 %1115
        %v1117 = vadd.f32 %v1024, %v1026
        %1118 = vadd.xlane.f32.xlu0 %v1117
        %v1119 = vpop.xlane.xlu0 %1118
        %v1120 = vadd.f32 %v1028, %v1030
        %1121 = vadd.xlane.f32.xlu0 %v1120
        %v1122 = vpop.xlane.xlu0 %1121
        %v1123 = vadd.f32 %v1032, %v1034
        %1124 = vadd.xlane.f32.xlu0 %v1123
        %v1125 = vpop.xlane.xlu0 %1124
        %v1126 = vadd.f32 %v1036, %v1038
        %1127 = vadd.xlane.f32.xlu0 %v1126
        %v1128 = vpop.xlane.xlu0 %1127
        %v1129 = vadd.f32 %v1040, %v1042
        %1130 = vadd.xlane.f32.xlu0 %v1129
        %v1131 = vpop.xlane.xlu0 %1130
        %v1132 = vadd.f32 %v1044, %v1046
        %1133 = vadd.xlane.f32.xlu0 %v1132
        %v1134 = vpop.xlane.xlu0 %1133
        %v1135 = vadd.f32 %v1048, %v1050
        %1136 = vadd.xlane.f32.xlu0 %v1135
        %v1137 = vpop.xlane.xlu0 %1136
        %v1138 = vadd.f32 %v1052, %v1054
        %1139 = vadd.xlane.f32.xlu0 %v1138
        %v1140 = vpop.xlane.xlu0 %1139
        %v1141 = vadd.f32 %v1056, %v1058
        %1142 = vadd.xlane.f32.xlu0 %v1141
        %v1143 = vpop.xlane.xlu0 %1142
        %v1144 = vadd.f32 %v1060, %v1062
        %1145 = vadd.xlane.f32.xlu0 %v1144
        %v1146 = vpop.xlane.xlu0 %1145
        %v1147 = vadd.f32 %v1064, %v1066
        %1148 = vadd.xlane.f32.xlu0 %v1147
        %v1149 = vpop.xlane.xlu0 %1148
        %v1150 = vadd.f32 %v1068, %v1070
        %1151 = vadd.xlane.f32.xlu0 %v1150
        %v1152 = vpop.xlane.xlu0 %1151
        %v1153 = vadd.f32 %v1072, %v1074
        %1154 = vadd.xlane.f32.xlu0 %v1153
        %v1155 = vpop.xlane.xlu0 %1154
        %v1156 = vadd.f32 %v1076, %v1078
        %1157 = vadd.xlane.f32.xlu0 %v1156
        %v1158 = vpop.xlane.xlu0 %1157
        %v1159 = vadd.f32 %v1095, %v1113
        %v1160 = vadd.f32 %v1096, %v1116
        %v1161 = vadd.f32 %v1097, %v1119
        %v1162 = vadd.f32 %v1098, %v1122
        %v1163 = vadd.f32 %v1099, %v1125
        %v1164 = vadd.f32 %v1100, %v1128
        %v1165 = vadd.f32 %v1101, %v1131
        %v1166 = vadd.f32 %v1102, %v1134
        %v1167 = vadd.f32 %v1103, %v1137
        %v1168 = vadd.f32 %v1104, %v1140
        %v1169 = vadd.f32 %v1105, %v1143
        %v1170 = vadd.f32 %v1106, %v1146
        %v1171 = vadd.f32 %v1107, %v1149
        %v1172 = vadd.f32 %v1108, %v1152
        %v1173 = vadd.f32 %v1109, %v1155
        %v1174 = vadd.f32 %v1110, %v1158
        %vm1175 = vcmask 7168
        %1176 = vst.msk [vmem:[#allocation3] sm:$0xff] %vm1175, %v1159
        %1177 = vst.msk [vmem:[#allocation3 + $0x8] sm:$0xff] %vm1175, %v1160
        %1178 = vst.msk [vmem:[#allocation3 + $0x10] sm:$0xff] %vm1175, %v1161
        %1179 = vst.msk [vmem:[#allocation3 + $0x18] sm:$0xff] %vm1175, %v1162
        %1180 = vst.msk [vmem:[#allocation3 + $0x20] sm:$0xff] %vm1175, %v1163
        %1181 = vst.msk [vmem:[#allocation3 + $0x28] sm:$0xff] %vm1175, %v1164
        %1182 = vst.msk [vmem:[#allocation3 + $0x30] sm:$0xff] %vm1175, %v1165
        %1183 = vst.msk [vmem:[#allocation3 + $0x38] sm:$0xff] %vm1175, %v1166
        %1184 = vst.msk [vmem:[#allocation3 + $0x40] sm:$0xff] %vm1175, %v1167
        %1185 = vst.msk [vmem:[#allocation3 + $0x48] sm:$0xff] %vm1175, %v1168
        %1186 = vst.msk [vmem:[#allocation3 + $0x50] sm:$0xff] %vm1175, %v1169
        %1187 = vst.msk [vmem:[#allocation3 + $0x58] sm:$0xff] %vm1175, %v1170
        %1188 = vst.msk [vmem:[#allocation3 + $0x60] sm:$0xff] %vm1175, %v1171
        %1189 = vst.msk [vmem:[#allocation3 + $0x68] sm:$0xff] %vm1175, %v1172
        %1190 = vst.msk [vmem:[#allocation3 + $0x70] sm:$0xff] %vm1175, %v1173
        %1191 = vst.msk [vmem:[#allocation3 + $0x78] sm:$0xff] %vm1175, %v1174
        %v1192 = vld [vmem:[%s324] sm:$0xff]
        %v1193 = vld [vmem:[%s324 + $0x8] sm:$0xff]
        %v1194 = vld [vmem:[%s324 + $0x10] sm:$0xff]
        %v1195 = vld [vmem:[%s324 + $0x18] sm:$0xff]
        %v1196 = vld [vmem:[%s324 + $0x20] sm:$0xff]
        %v1197 = vld [vmem:[%s324 + $0x28] sm:$0xff]
        %v1198 = vld [vmem:[%s324 + $0x30] sm:$0xff]
        %v1199 = vld [vmem:[%s324 + $0x38] sm:$0xff]
        %v1200 = vunpack.c.0.s8 %v1192
        %v1201 = vunpack.c.0.s8 %v1193
        %v1202 = vunpack.c.1.s8 %v1192
        %v1203 = vunpack.c.1.s8 %v1193
        %v1204 = vunpack.c.2.s8 %v1192
        %v1205 = vunpack.c.2.s8 %v1193
        %v1206 = vunpack.c.3.s8 %v1192
        %v1207 = vunpack.c.3.s8 %v1193
        %v1208 = vunpack.c.0.s8 %v1194
        %v1209 = vunpack.c.0.s8 %v1195
        %v1210 = vunpack.c.1.s8 %v1194
        %v1211 = vunpack.c.1.s8 %v1195
        %v1212 = vunpack.c.2.s8 %v1194
        %v1213 = vunpack.c.2.s8 %v1195
        %v1214 = vunpack.c.3.s8 %v1194
        %v1215 = vunpack.c.3.s8 %v1195
        %v1216 = vunpack.c.0.s8 %v1196
        %v1217 = vunpack.c.0.s8 %v1197
        %v1218 = vunpack.c.1.s8 %v1196
        %v1219 = vunpack.c.1.s8 %v1197
        %v1220 = vunpack.c.2.s8 %v1196
        %v1221 = vunpack.c.2.s8 %v1197
        %v1222 = vunpack.c.3.s8 %v1196
        %v1223 = vunpack.c.3.s8 %v1197
        %v1224 = vunpack.c.0.s8 %v1198
        %v1225 = vunpack.c.0.s8 %v1199
        %v1226 = vunpack.c.1.s8 %v1198
        %v1227 = vunpack.c.1.s8 %v1199
        %v1228 = vunpack.c.2.s8 %v1198
        %v1229 = vunpack.c.2.s8 %v1199
        %v1230 = vunpack.c.3.s8 %v1198
        %v1231 = vunpack.c.3.s8 %v1199
        %v1232 = vand.u32 %v1200, 255
        %v1233 = vand.u32 %v1201, 255
        %v1234 = vand.u32 %v1202, 255
        %v1235 = vand.u32 %v1203, 255
        %v1236 = vand.u32 %v1204, 255
        %v1237 = vand.u32 %v1205, 255
        %v1238 = vand.u32 %v1206, 255
        %v1239 = vand.u32 %v1207, 255
        %v1240 = vand.u32 %v1208, 255
        %v1241 = vand.u32 %v1209, 255
        %v1242 = vand.u32 %v1210, 255
        %v1243 = vand.u32 %v1211, 255
        %v1244 = vand.u32 %v1212, 255
        %v1245 = vand.u32 %v1213, 255
        %v1246 = vand.u32 %v1214, 255
        %v1247 = vand.u32 %v1215, 255
        %v1248 = vand.u32 %v1216, 255
        %v1249 = vand.u32 %v1217, 255
        %v1250 = vand.u32 %v1218, 255
        %v1251 = vand.u32 %v1219, 255
        %v1252 = vand.u32 %v1220, 255
        %v1253 = vand.u32 %v1221, 255
        %v1254 = vand.u32 %v1222, 255
        %v1255 = vand.u32 %v1223, 255
        %v1256 = vand.u32 %v1224, 255
        %v1257 = vand.u32 %v1225, 255
        %v1258 = vand.u32 %v1226, 255
        %v1259 = vand.u32 %v1227, 255
        %v1260 = vand.u32 %v1228, 255
        %v1261 = vand.u32 %v1229, 255
        %v1262 = vand.u32 %v1230, 255
        %v1263 = vand.u32 %v1231, 255
        %v1264 = vcvt.s32.f32 %v1232
        %v1265 = vcvt.s32.f32 %v1233
        %v1266 = vcvt.s32.f32 %v1234
        %v1267 = vcvt.s32.f32 %v1235
        %v1268 = vcvt.s32.f32 %v1236
        %v1269 = vcvt.s32.f32 %v1237
        %v1270 = vcvt.s32.f32 %v1238
        %v1271 = vcvt.s32.f32 %v1239
        %v1272 = vcvt.s32.f32 %v1240
        %v1273 = vcvt.s32.f32 %v1241
        %v1274 = vcvt.s32.f32 %v1242
        %v1275 = vcvt.s32.f32 %v1243
        %v1276 = vcvt.s32.f32 %v1244
        %v1277 = vcvt.s32.f32 %v1245
        %v1278 = vcvt.s32.f32 %v1246
        %v1279 = vcvt.s32.f32 %v1247
        %v1280 = vcvt.s32.f32 %v1248
        %v1281 = vcvt.s32.f32 %v1249
        %v1282 = vcvt.s32.f32 %v1250
        %v1283 = vcvt.s32.f32 %v1251
        %v1284 = vcvt.s32.f32 %v1252
        %v1285 = vcvt.s32.f32 %v1253
        %v1286 = vcvt.s32.f32 %v1254
        %v1287 = vcvt.s32.f32 %v1255
        %v1288 = vcvt.s32.f32 %v1256
        %v1289 = vcvt.s32.f32 %v1257
        %v1290 = vcvt.s32.f32 %v1258
        %v1291 = vcvt.s32.f32 %v1259
        %v1292 = vcvt.s32.f32 %v1260
        %v1293 = vcvt.s32.f32 %v1261
        %v1294 = vcvt.s32.f32 %v1262
        %v1295 = vcvt.s32.f32 %v1263
        %v1296 = vmul.f32 %v1016, %v1264
        %v1297 = vmul.f32 %v1018, %v1265
        %v1298 = vmul.f32 %v1020, %v1266
        %v1299 = vmul.f32 %v1022, %v1267
        %v1300 = vmul.f32 %v1024, %v1268
        %v1301 = vmul.f32 %v1026, %v1269
        %v1302 = vmul.f32 %v1028, %v1270
        %v1303 = vmul.f32 %v1030, %v1271
        %v1304 = vmul.f32 %v1032, %v1272
        %v1305 = vmul.f32 %v1034, %v1273
        %v1306 = vmul.f32 %v1036, %v1274
        %v1307 = vmul.f32 %v1038, %v1275
        %v1308 = vmul.f32 %v1040, %v1276
        %v1309 = vmul.f32 %v1042, %v1277
        %v1310 = vmul.f32 %v1044, %v1278
        %v1311 = vmul.f32 %v1046, %v1279
        %v1312 = vmul.f32 %v1048, %v1280
        %v1313 = vmul.f32 %v1050, %v1281
        %v1314 = vmul.f32 %v1052, %v1282
        %v1315 = vmul.f32 %v1054, %v1283
        %v1316 = vmul.f32 %v1056, %v1284
        %v1317 = vmul.f32 %v1058, %v1285
        %v1318 = vmul.f32 %v1060, %v1286
        %v1319 = vmul.f32 %v1062, %v1287
        %v1320 = vmul.f32 %v1064, %v1288
        %v1321 = vmul.f32 %v1066, %v1289
        %v1322 = vmul.f32 %v1068, %v1290
        %v1323 = vmul.f32 %v1070, %v1291
        %v1324 = vmul.f32 %v1072, %v1292
        %v1325 = vmul.f32 %v1074, %v1293
        %v1326 = vmul.f32 %v1076, %v1294
        %v1327 = vmul.f32 %v1078, %v1295
        %v1328 = vpack.c.bf16 %v1297, %v1296
        %v1329 = vpack.c.bf16 %v1299, %v1298
        %v1330 = vpack.c.bf16 %v1301, %v1300
        %v1331 = vpack.c.bf16 %v1303, %v1302
        %v1332 = vpack.c.bf16 %v1305, %v1304
        %v1333 = vpack.c.bf16 %v1307, %v1306
        %v1334 = vpack.c.bf16 %v1309, %v1308
        %v1335 = vpack.c.bf16 %v1311, %v1310
        %v1336 = vpack.c.bf16 %v1313, %v1312
        %v1337 = vpack.c.bf16 %v1315, %v1314
        %v1338 = vpack.c.bf16 %v1317, %v1316
        %v1339 = vpack.c.bf16 %v1319, %v1318
        %v1340 = vpack.c.bf16 %v1321, %v1320
        %v1341 = vpack.c.bf16 %v1323, %v1322
        %v1342 = vpack.c.bf16 %v1325, %v1324
        %v1343 = vpack.c.bf16 %v1327, %v1326
        %v1344 = vld [vmem:[%s314] sm:$0xff]
        %v1345 = vld [vmem:[%s314 + $0x8] sm:$0xff]
        %v1346 = vld [vmem:[%s314 + $0x10] sm:$0xff]
        %v1347 = vld [vmem:[%s314 + $0x18] sm:$0xff]
        %v1348 = vld [vmem:[%s314 + $0x20] sm:$0xff]
        %v1349 = vld [vmem:[%s314 + $0x28] sm:$0xff]
        %v1350 = vld [vmem:[%s314 + $0x30] sm:$0xff]
        %v1351 = vld [vmem:[%s314 + $0x38] sm:$0xff]
        %v1352 = vld [vmem:[%s314 + $0x40] sm:$0xff]
        %v1353 = vld [vmem:[%s314 + $0x48] sm:$0xff]
        %v1354 = vld [vmem:[%s314 + $0x50] sm:$0xff]
        %v1355 = vld [vmem:[%s314 + $0x58] sm:$0xff]
        %v1356 = vld [vmem:[%s314 + $0x60] sm:$0xff]
        %v1357 = vld [vmem:[%s314 + $0x68] sm:$0xff]
        %v1358 = vld [vmem:[%s314 + $0x70] sm:$0xff]
        %v1359 = vld [vmem:[%s314 + $0x78] sm:$0xff]
        %v1360 = vld [vmem:[%s314 + $0x80] sm:$0xff]
        %v1361 = vld [vmem:[%s314 + $0x88] sm:$0xff]
        %v1362 = vld [vmem:[%s314 + $0x90] sm:$0xff]
        %v1363 = vld [vmem:[%s314 + $0x98] sm:$0xff]
        %v1364 = vld [vmem:[%s314 + $0xa0] sm:$0xff]
        %v1365 = vld [vmem:[%s314 + $0xa8] sm:$0xff]
        %v1366 = vld [vmem:[%s314 + $0xb0] sm:$0xff]
        %v1367 = vld [vmem:[%s314 + $0xb8] sm:$0xff]
        %v1368 = vld [vmem:[%s314 + $0xc0] sm:$0xff]
        %v1369 = vld [vmem:[%s314 + $0xc8] sm:$0xff]
        %v1370 = vld [vmem:[%s314 + $0xd0] sm:$0xff]
        %v1371 = vld [vmem:[%s314 + $0xd8] sm:$0xff]
        %v1372 = vld [vmem:[%s314 + $0xe0] sm:$0xff]
        %v1373 = vld [vmem:[%s314 + $0xe8] sm:$0xff]
        %v1374 = vld [vmem:[%s314 + $0xf0] sm:$0xff]
        %v1375 = vld [vmem:[%s314 + $0xf8] sm:$0xff]
        %v1376 = vpack.c.bf16 %v1344, %v1344
        %v1377 = vpack.c.bf16 %v1345, %v1345
        %v1378 = vpack.c.bf16 %v1346, %v1346
        %v1379 = vpack.c.bf16 %v1347, %v1347
        %v1380 = vpack.c.bf16 %v1348, %v1348
        %v1381 = vpack.c.bf16 %v1349, %v1349
        %v1382 = vpack.c.bf16 %v1350, %v1350
        %v1383 = vpack.c.bf16 %v1351, %v1351
        %v1384 = vpack.c.bf16 %v1352, %v1352
        %v1385 = vpack.c.bf16 %v1353, %v1353
        %v1386 = vpack.c.bf16 %v1354, %v1354
        %v1387 = vpack.c.bf16 %v1355, %v1355
        %v1388 = vpack.c.bf16 %v1356, %v1356
        %v1389 = vpack.c.bf16 %v1357, %v1357
        %v1390 = vpack.c.bf16 %v1358, %v1358
        %v1391 = vpack.c.bf16 %v1359, %v1359
        %v1392 = vpack.c.bf16 %v1360, %v1360
        %v1393 = vpack.c.bf16 %v1361, %v1361
        %v1394 = vpack.c.bf16 %v1362, %v1362
        %v1395 = vpack.c.bf16 %v1363, %v1363
        %v1396 = vpack.c.bf16 %v1364, %v1364
        %v1397 = vpack.c.bf16 %v1365, %v1365
        %v1398 = vpack.c.bf16 %v1366, %v1366
        %v1399 = vpack.c.bf16 %v1367, %v1367
        %v1400 = vpack.c.bf16 %v1368, %v1368
        %v1401 = vpack.c.bf16 %v1369, %v1369
        %v1402 = vpack.c.bf16 %v1370, %v1370
        %v1403 = vpack.c.bf16 %v1371, %v1371
        %v1404 = vpack.c.bf16 %v1372, %v1372
        %v1405 = vpack.c.bf16 %v1373, %v1373
        %v1406 = vpack.c.bf16 %v1374, %v1374
        %v1407 = vpack.c.bf16 %v1375, %v1375
        %v1408 = vld [vmem:[#allocation4] sm:$0xff]
        %v1409 = vld [vmem:[#allocation4 + $0x8] sm:$0xff]
        %v1410 = vld [vmem:[#allocation4 + $0x10] sm:$0xff]
        %v1411 = vld [vmem:[#allocation4 + $0x18] sm:$0xff]
        %v1412 = vld [vmem:[#allocation4 + $0x20] sm:$0xff]
        %v1413 = vld [vmem:[#allocation4 + $0x28] sm:$0xff]
        %v1414 = vld [vmem:[#allocation4 + $0x30] sm:$0xff]
        %v1415 = vld [vmem:[#allocation4 + $0x38] sm:$0xff]
        %v1416 = vld [vmem:[#allocation4 + $0x40] sm:$0xff]
        %v1417 = vld [vmem:[#allocation4 + $0x48] sm:$0xff]
        %v1418 = vld [vmem:[#allocation4 + $0x50] sm:$0xff]
        %v1419 = vld [vmem:[#allocation4 + $0x58] sm:$0xff]
        %v1420 = vld [vmem:[#allocation4 + $0x60] sm:$0xff]
        %v1421 = vld [vmem:[#allocation4 + $0x68] sm:$0xff]
        %v1422 = vld [vmem:[#allocation4 + $0x70] sm:$0xff]
        %v1423 = vld [vmem:[#allocation4 + $0x78] sm:$0xff]
        %1425 = vset.pattern.permute.xlu0 0
        %1426 = vperm.xlu0 %1425, %v872
        %v1427 = vpop.permute.xlu0 %1426
        %1430 = vset.pattern.permute.xlu0 0
        %1431 = vperm.xlu0 %1430, %v874
        %v1432 = vpop.permute.xlu0 %1431
        %1435 = vset.pattern.permute.xlu0 0
        %1436 = vperm.xlu0 %1435, %v876
        %v1437 = vpop.permute.xlu0 %1436
        %1440 = vset.pattern.permute.xlu0 0
        %1441 = vperm.xlu0 %1440, %v878
        %v1442 = vpop.permute.xlu0 %1441
        %1445 = vset.pattern.permute.xlu0 0
        %1446 = vperm.xlu0 %1445, %v880
        %v1447 = vpop.permute.xlu0 %1446
        %1450 = vset.pattern.permute.xlu0 0
        %1451 = vperm.xlu0 %1450, %v882
        %v1452 = vpop.permute.xlu0 %1451
        %1455 = vset.pattern.permute.xlu0 0
        %1456 = vperm.xlu0 %1455, %v884
        %v1457 = vpop.permute.xlu0 %1456
        %1460 = vset.pattern.permute.xlu0 0
        %1461 = vperm.xlu0 %1460, %v886
        %v1462 = vpop.permute.xlu0 %1461
        %1465 = vset.pattern.permute.xlu0 0
        %1466 = vperm.xlu0 %1465, %v888
        %v1467 = vpop.permute.xlu0 %1466
        %1470 = vset.pattern.permute.xlu0 0
        %1471 = vperm.xlu0 %1470, %v890
        %v1472 = vpop.permute.xlu0 %1471
        %1475 = vset.pattern.permute.xlu0 0
        %1476 = vperm.xlu0 %1475, %v892
        %v1477 = vpop.permute.xlu0 %1476
        %1480 = vset.pattern.permute.xlu0 0
        %1481 = vperm.xlu0 %1480, %v894
        %v1482 = vpop.permute.xlu0 %1481
        %1485 = vset.pattern.permute.xlu0 0
        %1486 = vperm.xlu0 %1485, %v896
        %v1487 = vpop.permute.xlu0 %1486
        %1490 = vset.pattern.permute.xlu0 0
        %1491 = vperm.xlu0 %1490, %v898
        %v1492 = vpop.permute.xlu0 %1491
        %1495 = vset.pattern.permute.xlu0 0
        %1496 = vperm.xlu0 %1495, %v900
        %v1497 = vpop.permute.xlu0 %1496
        %1500 = vset.pattern.permute.xlu0 0
        %1501 = vperm.xlu0 %1500, %v902
        %v1502 = vpop.permute.xlu0 %1501
        %v1504 = vmul.f32 %v1427, %v1408
        %v1505 = vmul.f32 %v1432, %v1409
        %v1506 = vmul.f32 %v1437, %v1410
        %v1507 = vmul.f32 %v1442, %v1411
        %v1508 = vmul.f32 %v1447, %v1412
        %v1509 = vmul.f32 %v1452, %v1413
        %v1510 = vmul.f32 %v1457, %v1414
        %v1511 = vmul.f32 %v1462, %v1415
        %v1512 = vmul.f32 %v1467, %v1416
        %v1513 = vmul.f32 %v1472, %v1417
        %v1514 = vmul.f32 %v1477, %v1418
        %v1515 = vmul.f32 %v1482, %v1419
        %v1516 = vmul.f32 %v1487, %v1420
        %v1517 = vmul.f32 %v1492, %v1421
        %v1518 = vmul.f32 %v1497, %v1422
        %v1519 = vmul.f32 %v1502, %v1423
        %v1536 = vunpack.c.l.b16 %v1328
        %v1537 = vunpack.c.h.b16 %v1328
        %v1538 = vunpack.c.l.b16 %v1329
        %v1539 = vunpack.c.h.b16 %v1329
        %v1540 = vunpack.c.l.b16 %v1330
        %v1541 = vunpack.c.h.b16 %v1330
        %v1542 = vunpack.c.l.b16 %v1331
        %v1543 = vunpack.c.h.b16 %v1331
        %v1544 = vunpack.c.l.b16 %v1332
        %v1545 = vunpack.c.h.b16 %v1332
        %v1546 = vunpack.c.l.b16 %v1333
        %v1547 = vunpack.c.h.b16 %v1333
        %v1548 = vunpack.c.l.b16 %v1334
        %v1549 = vunpack.c.h.b16 %v1334
        %v1550 = vunpack.c.l.b16 %v1335
        %v1551 = vunpack.c.h.b16 %v1335
        %v1552 = vunpack.c.l.b16 %v1336
        %v1553 = vunpack.c.h.b16 %v1336
        %v1554 = vunpack.c.l.b16 %v1337
        %v1555 = vunpack.c.h.b16 %v1337
        %v1556 = vunpack.c.l.b16 %v1338
        %v1557 = vunpack.c.h.b16 %v1338
        %v1558 = vunpack.c.l.b16 %v1339
        %v1559 = vunpack.c.h.b16 %v1339
        %v1560 = vunpack.c.l.b16 %v1340
        %v1561 = vunpack.c.h.b16 %v1340
        %v1562 = vunpack.c.l.b16 %v1341
        %v1563 = vunpack.c.h.b16 %v1341
        %v1564 = vunpack.c.l.b16 %v1342
        %v1565 = vunpack.c.h.b16 %v1342
        %v1566 = vunpack.c.l.b16 %v1343
        %v1567 = vunpack.c.h.b16 %v1343
        %v1568 = vpack.c.b16 %v1538, %v1536
        %v1569 = vpack.c.b16 %v1539, %v1537
        %v1570 = vpack.c.b16 %v1542, %v1540
        %v1571 = vpack.c.b16 %v1543, %v1541
        %v1572 = vpack.c.b16 %v1546, %v1544
        %v1573 = vpack.c.b16 %v1547, %v1545
        %v1574 = vpack.c.b16 %v1550, %v1548
        %v1575 = vpack.c.b16 %v1551, %v1549
        %v1576 = vpack.c.b16 %v1554, %v1552
        %v1577 = vpack.c.b16 %v1555, %v1553
        %v1578 = vpack.c.b16 %v1558, %v1556
        %v1579 = vpack.c.b16 %v1559, %v1557
        %v1580 = vpack.c.b16 %v1562, %v1560
        %v1581 = vpack.c.b16 %v1563, %v1561
        %v1582 = vpack.c.b16 %v1566, %v1564
        %v1583 = vpack.c.b16 %v1567, %v1565
        %v1632 = vunpack.c.l.b16 %v1376
        %v1633 = vunpack.c.l.b16 %v1377
        %v1634 = vunpack.c.l.b16 %v1378
        %v1635 = vunpack.c.l.b16 %v1379
        %v1636 = vunpack.c.l.b16 %v1380
        %v1637 = vunpack.c.l.b16 %v1381
        %v1638 = vunpack.c.l.b16 %v1382
        %v1639 = vunpack.c.l.b16 %v1383
        %v1640 = vunpack.c.l.b16 %v1384
        %v1641 = vunpack.c.l.b16 %v1385
        %v1642 = vunpack.c.l.b16 %v1386
        %v1643 = vunpack.c.l.b16 %v1387
        %v1644 = vunpack.c.l.b16 %v1388
        %v1645 = vunpack.c.l.b16 %v1389
        %v1646 = vunpack.c.l.b16 %v1390
        %v1647 = vunpack.c.l.b16 %v1391
        %v1648 = vunpack.c.l.b16 %v1392
        %v1649 = vunpack.c.l.b16 %v1393
        %v1650 = vunpack.c.l.b16 %v1394
        %v1651 = vunpack.c.l.b16 %v1395
        %v1652 = vunpack.c.l.b16 %v1396
        %v1653 = vunpack.c.l.b16 %v1397
        %v1654 = vunpack.c.l.b16 %v1398
        %v1655 = vunpack.c.l.b16 %v1399
        %v1656 = vunpack.c.l.b16 %v1400
        %v1657 = vunpack.c.l.b16 %v1401
        %v1658 = vunpack.c.l.b16 %v1402
        %v1659 = vunpack.c.l.b16 %v1403
        %v1660 = vunpack.c.l.b16 %v1404
        %v1661 = vunpack.c.l.b16 %v1405
        %v1662 = vunpack.c.l.b16 %v1406
        %v1663 = vunpack.c.l.b16 %v1407
        %v1664 = vpack.c.b16 %v1633, %v1632
        %v1665 = vpack.c.b16 %v1635, %v1634
        %v1666 = vpack.c.b16 %v1637, %v1636
        %v1667 = vpack.c.b16 %v1639, %v1638
        %v1668 = vpack.c.b16 %v1641, %v1640
        %v1669 = vpack.c.b16 %v1643, %v1642
        %v1670 = vpack.c.b16 %v1645, %v1644
        %v1671 = vpack.c.b16 %v1647, %v1646
        %v1672 = vpack.c.b16 %v1649, %v1648
        %v1673 = vpack.c.b16 %v1651, %v1650
        %v1674 = vpack.c.b16 %v1653, %v1652
        %v1675 = vpack.c.b16 %v1655, %v1654
        %v1676 = vpack.c.b16 %v1657, %v1656
        %v1677 = vpack.c.b16 %v1659, %v1658
        %v1678 = vpack.c.b16 %v1661, %v1660
        %v1679 = vpack.c.b16 %v1663, %v1662
        %1696 = vmatpush.bf16.msra.mxu0 %v1671
        %1697 = vmatpush.bf16.msra.mxu0 %v1670
        %1698 = vmatpush.bf16.msra.mxu0 %v1669
        %1699 = vmatpush.bf16.msra.mxu0 %v1668
        %1700 = vmatpush.bf16.msra.mxu0 %v1667
        %1701 = vmatpush.bf16.msra.mxu0 %v1666
        %1702 = vmatpush.bf16.msra.mxu0 %v1665
        %1703 = vmatpush.bf16.msra.mxu0 %v1664
        %1704 = vmatmul.bf16.gmra.mxu0 %v1568
        %v1705 = vpop.f32.mrf.mxu0
        %v1706 = vadd.f32 0.0, %v1705
        %v1707 = vpop.f32.mrf.mxu0
        %v1708 = vadd.f32 0.0, %v1707
        %1709 = vmatmul.bf16.gmra.mxu0 %v1570
        %v1710 = vpop.f32.mrf.mxu0
        %v1711 = vadd.f32 0.0, %v1710
        %v1712 = vpop.f32.mrf.mxu0
        %v1713 = vadd.f32 0.0, %v1712
        %1714 = vmatmul.bf16.gmra.mxu0 %v1572
        %v1715 = vpop.f32.mrf.mxu0
        %v1716 = vadd.f32 0.0, %v1715
        %v1717 = vpop.f32.mrf.mxu0
        %v1718 = vadd.f32 0.0, %v1717
        %1719 = vmatmul.bf16.gmra.mxu0 %v1574
        %v1720 = vpop.f32.mrf.mxu0
        %v1721 = vadd.f32 0.0, %v1720
        %v1722 = vpop.f32.mrf.mxu0
        %v1723 = vadd.f32 0.0, %v1722
        %1724 = vmatmul.bf16.gmra.mxu0 %v1576
        %v1725 = vpop.f32.mrf.mxu0
        %v1726 = vadd.f32 0.0, %v1725
        %v1727 = vpop.f32.mrf.mxu0
        %v1728 = vadd.f32 0.0, %v1727
        %1729 = vmatmul.bf16.gmra.mxu0 %v1578
        %v1730 = vpop.f32.mrf.mxu0
        %v1731 = vadd.f32 0.0, %v1730
        %v1732 = vpop.f32.mrf.mxu0
        %v1733 = vadd.f32 0.0, %v1732
        %1734 = vmatmul.bf16.gmra.mxu0 %v1580
        %v1735 = vpop.f32.mrf.mxu0
        %v1736 = vadd.f32 0.0, %v1735
        %v1737 = vpop.f32.mrf.mxu0
        %v1738 = vadd.f32 0.0, %v1737
        %1739 = vmatmul.bf16.gmra.mxu0 %v1582
        %v1740 = vpop.f32.mrf.mxu0
        %v1741 = vadd.f32 0.0, %v1740
        %v1742 = vpop.f32.mrf.mxu0
        %v1743 = vadd.f32 0.0, %v1742
        %1744 = vdwg.mxu0
        %1745 = vmatpush.bf16.msra.mxu0 %v1679
        %1746 = vmatpush.bf16.msra.mxu0 %v1678
        %1747 = vmatpush.bf16.msra.mxu0 %v1677
        %1748 = vmatpush.bf16.msra.mxu0 %v1676
        %1749 = vmatpush.bf16.msra.mxu0 %v1675
        %1750 = vmatpush.bf16.msra.mxu0 %v1674
        %1751 = vmatpush.bf16.msra.mxu0 %v1673
        %1752 = vmatpush.bf16.msra.mxu0 %v1672
        %1753 = vmatmul.bf16.gmra.mxu0 %v1569
        %v1754 = vpop.f32.mrf.mxu0
        %v1755 = vadd.f32 %v1706, %v1754
        %v1756 = vpop.f32.mrf.mxu0
        %v1757 = vadd.f32 %v1708, %v1756
        %1758 = vmatmul.bf16.gmra.mxu0 %v1571
        %v1759 = vpop.f32.mrf.mxu0
        %v1760 = vadd.f32 %v1711, %v1759
        %v1761 = vpop.f32.mrf.mxu0
        %v1762 = vadd.f32 %v1713, %v1761
        %1763 = vmatmul.bf16.gmra.mxu0 %v1573
        %v1764 = vpop.f32.mrf.mxu0
        %v1765 = vadd.f32 %v1716, %v1764
        %v1766 = vpop.f32.mrf.mxu0
        %v1767 = vadd.f32 %v1718, %v1766
        %1768 = vmatmul.bf16.gmra.mxu0 %v1575
        %v1769 = vpop.f32.mrf.mxu0
        %v1770 = vadd.f32 %v1721, %v1769
        %v1771 = vpop.f32.mrf.mxu0
        %v1772 = vadd.f32 %v1723, %v1771
        %1773 = vmatmul.bf16.gmra.mxu0 %v1577
        %v1774 = vpop.f32.mrf.mxu0
        %v1775 = vadd.f32 %v1726, %v1774
        %v1776 = vpop.f32.mrf.mxu0
        %v1777 = vadd.f32 %v1728, %v1776
        %1778 = vmatmul.bf16.gmra.mxu0 %v1579
        %v1779 = vpop.f32.mrf.mxu0
        %v1780 = vadd.f32 %v1731, %v1779
        %v1781 = vpop.f32.mrf.mxu0
        %v1782 = vadd.f32 %v1733, %v1781
        %1783 = vmatmul.bf16.gmra.mxu0 %v1581
        %v1784 = vpop.f32.mrf.mxu0
        %v1785 = vadd.f32 %v1736, %v1784
        %v1786 = vpop.f32.mrf.mxu0
        %v1787 = vadd.f32 %v1738, %v1786
        %1788 = vmatmul.bf16.gmra.mxu0 %v1583
        %v1789 = vpop.f32.mrf.mxu0
        %v1790 = vadd.f32 %v1741, %v1789
        %v1791 = vpop.f32.mrf.mxu0
        %v1792 = vadd.f32 %v1743, %v1791
        %1793 = vdwg.mxu0
        %v1794 = vadd.f32 %v1504, %v1755
        %v1795 = vadd.f32 %v1505, %v1757
        %v1796 = vadd.f32 %v1506, %v1760
        %v1797 = vadd.f32 %v1507, %v1762
        %v1798 = vadd.f32 %v1508, %v1765
        %v1799 = vadd.f32 %v1509, %v1767
        %v1800 = vadd.f32 %v1510, %v1770
        %v1801 = vadd.f32 %v1511, %v1772
        %v1802 = vadd.f32 %v1512, %v1775
        %v1803 = vadd.f32 %v1513, %v1777
        %v1804 = vadd.f32 %v1514, %v1780
        %v1805 = vadd.f32 %v1515, %v1782
        %v1806 = vadd.f32 %v1516, %v1785
        %v1807 = vadd.f32 %v1517, %v1787
        %v1808 = vadd.f32 %v1518, %v1790
        %v1809 = vadd.f32 %v1519, %v1792
        %1810 = vst [vmem:[#allocation4] sm:$0xff] %v1794
        %1811 = vst [vmem:[#allocation4 + $0x8] sm:$0xff] %v1795
        %1812 = vst [vmem:[#allocation4 + $0x10] sm:$0xff] %v1796
        %1813 = vst [vmem:[#allocation4 + $0x18] sm:$0xff] %v1797
        %1814 = vst [vmem:[#allocation4 + $0x20] sm:$0xff] %v1798
        %1815 = vst [vmem:[#allocation4 + $0x28] sm:$0xff] %v1799
        %1816 = vst [vmem:[#allocation4 + $0x30] sm:$0xff] %v1800
        %1817 = vst [vmem:[#allocation4 + $0x38] sm:$0xff] %v1801
        %1818 = vst [vmem:[#allocation4 + $0x40] sm:$0xff] %v1802
        %1819 = vst [vmem:[#allocation4 + $0x48] sm:$0xff] %v1803
        %1820 = vst [vmem:[#allocation4 + $0x50] sm:$0xff] %v1804
        %1821 = vst [vmem:[#allocation4 + $0x58] sm:$0xff] %v1805
        %1822 = vst [vmem:[#allocation4 + $0x60] sm:$0xff] %v1806
        %1823 = vst [vmem:[#allocation4 + $0x68] sm:$0xff] %v1807
        %1824 = vst [vmem:[#allocation4 + $0x70] sm:$0xff] %v1808
        %1825 = vst [vmem:[#allocation4 + $0x78] sm:$0xff] %v1809
        %1826 = vst.msk [vmem:[#allocation2] sm:$0xff] %vm1175, %v839
        %1827 = vst.msk [vmem:[#allocation2 + $0x8] sm:$0xff] %vm1175, %v840
        %1828 = vst.msk [vmem:[#allocation2 + $0x10] sm:$0xff] %vm1175, %v841
        %1829 = vst.msk [vmem:[#allocation2 + $0x18] sm:$0xff] %vm1175, %v842
        %1830 = vst.msk [vmem:[#allocation2 + $0x20] sm:$0xff] %vm1175, %v843
        %1831 = vst.msk [vmem:[#allocation2 + $0x28] sm:$0xff] %vm1175, %v844
        %1832 = vst.msk [vmem:[#allocation2 + $0x30] sm:$0xff] %vm1175, %v845
        %1833 = vst.msk [vmem:[#allocation2 + $0x38] sm:$0xff] %vm1175, %v846
        %1834 = vst.msk [vmem:[#allocation2 + $0x40] sm:$0xff] %vm1175, %v847
        %1835 = vst.msk [vmem:[#allocation2 + $0x48] sm:$0xff] %vm1175, %v848
        %1836 = vst.msk [vmem:[#allocation2 + $0x50] sm:$0xff] %vm1175, %v849
        %1837 = vst.msk [vmem:[#allocation2 + $0x58] sm:$0xff] %vm1175, %v850
        %1838 = vst.msk [vmem:[#allocation2 + $0x60] sm:$0xff] %vm1175, %v851
        %1839 = vst.msk [vmem:[#allocation2 + $0x68] sm:$0xff] %vm1175, %v852
        %1840 = vst.msk [vmem:[#allocation2 + $0x70] sm:$0xff] %vm1175, %v853
        %1841 = vst.msk [vmem:[#allocation2 + $0x78] sm:$0xff] %vm1175, %v854
        // Predicated region
        $region57: #{tpu_custom_call.1} parent=35 // pred_check
          %p1842 = pneg %p368
        $region58: #{tpu_custom_call.1} parent=35 // pred_check_branch
          %1844 = sbr.rel (%p1842) target = $region60
        $region59: #{tpu_custom_call.1} parent=35 // pred_region
          %v1845 = vld [vmem:[#allocation3] sm:$0xff]
          %v1846 = vld [vmem:[#allocation3 + $0x8] sm:$0xff]
          %v1847 = vld [vmem:[#allocation3 + $0x10] sm:$0xff]
          %v1848 = vld [vmem:[#allocation3 + $0x18] sm:$0xff]
          %v1849 = vld [vmem:[#allocation3 + $0x20] sm:$0xff]
          %v1850 = vld [vmem:[#allocation3 + $0x28] sm:$0xff]
          %v1851 = vld [vmem:[#allocation3 + $0x30] sm:$0xff]
          %v1852 = vld [vmem:[#allocation3 + $0x38] sm:$0xff]
          %v1853 = vld [vmem:[#allocation3 + $0x40] sm:$0xff]
          %v1854 = vld [vmem:[#allocation3 + $0x48] sm:$0xff]
          %v1855 = vld [vmem:[#allocation3 + $0x50] sm:$0xff]
          %v1856 = vld [vmem:[#allocation3 + $0x58] sm:$0xff]
          %v1857 = vld [vmem:[#allocation3 + $0x60] sm:$0xff]
          %v1858 = vld [vmem:[#allocation3 + $0x68] sm:$0xff]
          %v1859 = vld [vmem:[#allocation3 + $0x70] sm:$0xff]
          %v1860 = vld [vmem:[#allocation3 + $0x78] sm:$0xff]
          %v1861 = vmul.f32 %v1845, 0.6
          %v1862 = vmul.f32 %v1846, 0.6
          %v1863 = vmul.f32 %v1847, 0.6
          %v1864 = vmul.f32 %v1848, 0.6
          %v1865 = vmul.f32 %v1849, 0.6
          %v1866 = vmul.f32 %v1850, 0.6
          %v1867 = vmul.f32 %v1851, 0.6
          %v1868 = vmul.f32 %v1852, 0.6
          %v1869 = vmul.f32 %v1853, 0.6
          %v1870 = vmul.f32 %v1854, 0.6
          %v1871 = vmul.f32 %v1855, 0.6
          %v1872 = vmul.f32 %v1856, 0.6
          %v1873 = vmul.f32 %v1857, 0.6
          %v1874 = vmul.f32 %v1858, 0.6
          %v1875 = vmul.f32 %v1859, 0.6
          %v1876 = vmul.f32 %v1860, 0.6
          %v1877 = vrcp.pop %v1861
          %v1878 = vrcp.pop %v1862
          %v1879 = vrcp.pop %v1863
          %v1880 = vrcp.pop %v1864
          %v1881 = vrcp.pop %v1865
          %v1882 = vrcp.pop %v1866
          %v1883 = vrcp.pop %v1867
          %v1884 = vrcp.pop %v1868
          %v1885 = vrcp.pop %v1869
          %v1886 = vrcp.pop %v1870
          %v1887 = vrcp.pop %v1871
          %v1888 = vrcp.pop %v1872
          %v1889 = vrcp.pop %v1873
          %v1890 = vrcp.pop %v1874
          %v1891 = vrcp.pop %v1875
          %v1892 = vrcp.pop %v1876
          %v1893 = vld [vmem:[#allocation4] sm:$0xff]
          %v1894 = vld [vmem:[#allocation4 + $0x8] sm:$0xff]
          %v1895 = vld [vmem:[#allocation4 + $0x10] sm:$0xff]
          %v1896 = vld [vmem:[#allocation4 + $0x18] sm:$0xff]
          %v1897 = vld [vmem:[#allocation4 + $0x20] sm:$0xff]
          %v1898 = vld [vmem:[#allocation4 + $0x28] sm:$0xff]
          %v1899 = vld [vmem:[#allocation4 + $0x30] sm:$0xff]
          %v1900 = vld [vmem:[#allocation4 + $0x38] sm:$0xff]
          %v1901 = vld [vmem:[#allocation4 + $0x40] sm:$0xff]
          %v1902 = vld [vmem:[#allocation4 + $0x48] sm:$0xff]
          %v1903 = vld [vmem:[#allocation4 + $0x50] sm:$0xff]
          %v1904 = vld [vmem:[#allocation4 + $0x58] sm:$0xff]
          %v1905 = vld [vmem:[#allocation4 + $0x60] sm:$0xff]
          %v1906 = vld [vmem:[#allocation4 + $0x68] sm:$0xff]
          %v1907 = vld [vmem:[#allocation4 + $0x70] sm:$0xff]
          %v1908 = vld [vmem:[#allocation4 + $0x78] sm:$0xff]
          %1910 = vset.pattern.permute.xlu0 0
          %1911 = vperm.xlu0 %1910, %v1877
          %v1912 = vpop.permute.xlu0 %1911
          %1915 = vset.pattern.permute.xlu0 0
          %1916 = vperm.xlu0 %1915, %v1878
          %v1917 = vpop.permute.xlu0 %1916
          %1920 = vset.pattern.permute.xlu0 0
          %1921 = vperm.xlu0 %1920, %v1879
          %v1922 = vpop.permute.xlu0 %1921
          %1925 = vset.pattern.permute.xlu0 0
          %1926 = vperm.xlu0 %1925, %v1880
          %v1927 = vpop.permute.xlu0 %1926
          %1930 = vset.pattern.permute.xlu0 0
          %1931 = vperm.xlu0 %1930, %v1881
          %v1932 = vpop.permute.xlu0 %1931
          %1935 = vset.pattern.permute.xlu0 0
          %1936 = vperm.xlu0 %1935, %v1882
          %v1937 = vpop.permute.xlu0 %1936
          %1940 = vset.pattern.permute.xlu0 0
          %1941 = vperm.xlu0 %1940, %v1883
          %v1942 = vpop.permute.xlu0 %1941
          %1945 = vset.pattern.permute.xlu0 0
          %1946 = vperm.xlu0 %1945, %v1884
          %v1947 = vpop.permute.xlu0 %1946
          %1950 = vset.pattern.permute.xlu0 0
          %1951 = vperm.xlu0 %1950, %v1885
          %v1952 = vpop.permute.xlu0 %1951
          %1955 = vset.pattern.permute.xlu0 0
          %1956 = vperm.xlu0 %1955, %v1886
          %v1957 = vpop.permute.xlu0 %1956
          %1960 = vset.pattern.permute.xlu0 0
          %1961 = vperm.xlu0 %1960, %v1887
          %v1962 = vpop.permute.xlu0 %1961
          %1965 = vset.pattern.permute.xlu0 0
          %1966 = vperm.xlu0 %1965, %v1888
          %v1967 = vpop.permute.xlu0 %1966
          %1970 = vset.pattern.permute.xlu0 0
          %1971 = vperm.xlu0 %1970, %v1889
          %v1972 = vpop.permute.xlu0 %1971
          %1975 = vset.pattern.permute.xlu0 0
          %1976 = vperm.xlu0 %1975, %v1890
          %v1977 = vpop.permute.xlu0 %1976
          %1980 = vset.pattern.permute.xlu0 0
          %1981 = vperm.xlu0 %1980, %v1891
          %v1982 = vpop.permute.xlu0 %1981
          %1985 = vset.pattern.permute.xlu0 0
          %1986 = vperm.xlu0 %1985, %v1892
          %v1987 = vpop.permute.xlu0 %1986
          %v1989 = vmul.f32 %v1893, %v1912
          %v1990 = vmul.f32 %v1894, %v1917
          %v1991 = vmul.f32 %v1895, %v1922
          %v1992 = vmul.f32 %v1896, %v1927
          %v1993 = vmul.f32 %v1897, %v1932
          %v1994 = vmul.f32 %v1898, %v1937
          %v1995 = vmul.f32 %v1899, %v1942
          %v1996 = vmul.f32 %v1900, %v1947
          %v1997 = vmul.f32 %v1901, %v1952
          %v1998 = vmul.f32 %v1902, %v1957
          %v1999 = vmul.f32 %v1903, %v1962
          %v2000 = vmul.f32 %v1904, %v1967
          %v2001 = vmul.f32 %v1905, %v1972
          %v2002 = vmul.f32 %v1906, %v1977
          %v2003 = vmul.f32 %v1907, %v1982
          %v2004 = vmul.f32 %v1908, %v1987
          %2005 = vst [vmem:[%s364] sm:$0xff] %v1989
          %2006 = vst [vmem:[%s364 + $0x8] sm:$0xff] %v1990
          %2007 = vst [vmem:[%s364 + $0x10] sm:$0xff] %v1991
          %2008 = vst [vmem:[%s364 + $0x18] sm:$0xff] %v1992
          %2009 = vst [vmem:[%s364 + $0x20] sm:$0xff] %v1993
          %2010 = vst [vmem:[%s364 + $0x28] sm:$0xff] %v1994
          %2011 = vst [vmem:[%s364 + $0x30] sm:$0xff] %v1995
          %2012 = vst [vmem:[%s364 + $0x38] sm:$0xff] %v1996
          %2013 = vst [vmem:[%s364 + $0x40] sm:$0xff] %v1997
          %2014 = vst [vmem:[%s364 + $0x48] sm:$0xff] %v1998
          %2015 = vst [vmem:[%s364 + $0x50] sm:$0xff] %v1999
          %2016 = vst [vmem:[%s364 + $0x58] sm:$0xff] %v2000
          %2017 = vst [vmem:[%s364 + $0x60] sm:$0xff] %v2001
          %2018 = vst [vmem:[%s364 + $0x68] sm:$0xff] %v2002
          %2019 = vst [vmem:[%s364 + $0x70] sm:$0xff] %v2003
          %2020 = vst [vmem:[%s364 + $0x78] sm:$0xff] %v2004
        $region60: #{tpu_custom_call.1} parent=35 // pred_fallthru
          _
        %s2021 = sand.u32 %s157, 1
        %s2022 = scalar_lea.sflag [#allocation7], %s2021
        %s2023 = sand.u32 %s157, 1
        %s2024 = smul.addr %s2023, 128
        %s2025 = scalar_lea.vmem [#allocation13], %s2024
        // Predicated region
        $region61: #{tpu_custom_call.1} parent=35 // pred_check
          %p2026 = pneg %p167
        $region62: #{tpu_custom_call.1} parent=35 // pred_check_branch
          %2028 = sbr.rel (%p2026) target = $region64
        $region63: #{tpu_custom_call.1} parent=35 // pred_region
          %2030 = vsyncadd %s2022, 0
          %s2031 = smul.addr %s31, 16
          %s2032 = smul.addr %s2031, 8
          %s2033 = scalar_lea.hbm %s4, %s2032
          %s2034 = sshll.u32 %s2025, 4
          %s2035 = int_to_ptr.vmem [resolvable:$true] %s2034
          %s2036 = sshll.u32 %s2033, 4
          %s2037 = int_to_ptr.hbm [resolvable:$true] %s2036
          %2042 = dma.vmem_to_hbm [thread:$0]  %s2035, 2048, %s2037, %s2022, 128, 128, 8
        $region64: #{tpu_custom_call.1} parent=35 // pred_fallthru
          _
      $region36: #{tpu_custom_call.1} parent=5 // pred_fallthru
        _
      %p2043 = scmp.le.s32.totalorder 2, %s22
      // Predicated region
      $region65: #{tpu_custom_call.1} parent=5 // pred_check
        %p2044 = pneg %p2043
      $region66: #{tpu_custom_call.1} parent=5 // pred_check_branch
        %2046 = sbr.rel (%p2044) target = $region68
      $region67: #{tpu_custom_call.1} parent=5 // pred_region
        %s2047 = ssub.s32 %s22, 2
        // Predicated region
        $region69: #{tpu_custom_call.1} parent=67 // pred_check
          %p2048 = pneg %p173
        $region70: #{tpu_custom_call.1} parent=67 // pred_check_branch
          %2050 = sbr.rel (%p2048) target = $region72
        $region71: #{tpu_custom_call.1} parent=67 // pred_region
          %s2051 = sand.u32 %s158, 1
          %s2052 = scalar_lea.sflag [#allocation7], %s2051
          %s2053 = sand.u32 %s158, 1
          %s2054 = smul.addr %s2053, 128
          %s2055 = scalar_lea.vmem [#allocation13], %s2054
          %2057 = dma.done %s2052, 2048
        $region72: #{tpu_custom_call.1} parent=67 // pred_fallthru
          _
      $region68: #{tpu_custom_call.1} parent=5 // pred_fallthru
        _
    $region6: #{tpu_custom_call.1} parent=1 // loop_footer
      %s26 = sadd.s32 1, %s22
    $region7: #{tpu_custom_call.1} parent=1 // loop_footer_branch
      %21 = sbr.rel target = $region3
    $region8: #{tpu_custom_call.1} parent=1 // loop_exit
      _
    %2058 = vsyncpa [#allocation6], 1
    %s2059 = scalar_lea.sflag [#allocation6], 1
    %2060 = vsyncpa %s2059, 1
    %2061 = vsyncpa [#allocation9], 1
    %s2062 = scalar_lea.sflag [#allocation9], 1
    %2063 = vsyncpa %s2062, 1
    %2064 = vsyncpa [#allocation12], 1
    %s2065 = scalar_lea.sflag [#allocation12], 1
    %2066 = vsyncpa %s2065, 1
    %2067 = vsyncpa [#allocation7], 1
    %s2068 = scalar_lea.sflag [#allocation7], 1
    %2069 = vsyncpa %s2068, 1

</llo_original>
